<compile_context>
chip_gen: v7x
topology: tpu7x:2x2x1
jax: 0.10.0
libtpu: 0.0.40
codegen_flags: <defaults>
</compile_context>

<pallas_src>
import functools

import jax
import jax.numpy as jnp
from jax import lax
from jax.experimental import pallas as pl
from jax.experimental.pallas import tpu as pltpu


def _conv_bn_relu_kernel(x_ref, w_ref, scale_ref, shift_ref, o_ref,
                         xflat_ref, xcol_ref, *, ksize, dilation, pad):
    """One batch element per grid step.

    x_ref:     (1, Cin, H*W)     un-padded input, pixel-flat (bf16)
    w_ref:     (Cout, K)         conv weights, K index = (kh*KW + kw)*Cin + ci
    scale_ref: (Cout, 1)         folded BN scale = gamma / sqrt(var + eps)
    shift_ref: (Cout, 1)         folded BN shift = (bias - mean)*scale + beta
    o_ref:     (1, Cout, H*W)    lane-dense output tile (f32)
    xflat_ref: (Cin, Hp*Wp)      VMEM scratch: row-strided padded image (bf16)
    xcol_ref:  (KW*Cin, P)       VMEM scratch: per-kh im2col chunk (bf16)
    """
    KH, KW = ksize
    dh, dw = dilation
    ph, pw = pad
    _, Cin, HW = x_ref.shape
    Cout, K = w_ref.shape
    Kc, P = xcol_ref.shape            # Kc = KW*Cin, P = (H-1)*Wp + W

    # Recover spatial extents (static Python ints).
    Wp_minus = 2 * pw
    # H*W and pads are static; W is derived from K ordering in the wrapper, so
    # pass it through the scratch shapes: P = (H-1)*Wp + W with Wp = W + 2*pw.
    # Solve: HW = H*W, P = HW + (H-1)*2*pw  ->  H = (P - HW)/(2*pw) + 1 if pw>0.
    if pw > 0:
        H = (P - HW) // (2 * pw) + 1
    else:
        H = (xflat_ref.shape[1] // (HW // max(P // max(1, 1), 1)))  # unused path
        H = P // (HW // P) if P else 1
    W = HW // H
    Wp = W + 2 * pw
    Hp = H + 2 * ph
    FLAT = Hp * Wp
    assert xflat_ref.shape == (Cin, FLAT)
    assert Kc == KW * Cin and P == (H - 1) * Wp + W

    zdt = xflat_ref.dtype

    # ---- (1) zero only the halo runs of the row-strided padded image ------
    # flat index of padded pixel (r, c) is r*Wp + c.  The interior rows are
    # written below, so only the padding runs need zeroing:
    #   [0, ph*Wp + pw)                      top rows + left pad of first row
    #   per interior row: a 2*pw-wide gap    (right pad of row h, left of h+1)
    #   [last_row_end, FLAT)                 right pad of last row + bottom
    # Re-done every grid step so it stays correct under "parallel" core
    # sharding (each core's scratch starts uninitialized).
    head = ph * Wp + pw
    if head > 0:
        xflat_ref[:, 0:head] = jnp.zeros((Cin, head), zdt)
    if pw > 0:
        for h in range(H - 1):
            g0 = (ph + h) * Wp + pw + W
            xflat_ref[:, g0:g0 + 2 * pw] = jnp.zeros((Cin, 2 * pw), zdt)
    tail0 = (ph + H - 1) * Wp + pw + W
    if FLAT - tail0 > 0:
        xflat_ref[:, tail0:FLAT] = jnp.zeros((Cin, FLAT - tail0), zdt)

    # ---- (2) in-kernel "same" padding: copy each input row into place -----
    # bf16 -> bf16, no casts; pixels stay on the 128-lane axis throughout.
    for h in range(H):
        d0 = (ph + h) * Wp + pw
        xflat_ref[:, d0:d0 + W] = x_ref[0, :, h * W:(h + 1) * W]

    # ---- (3) contraction chunked over kh -----------------------------------
    # Per kh: im2col the KW taps as full-width (Cin, P) lane-dense rows of
    # xcol (each tap is a contiguous slice of xflat -> no reshape, unmasked
    # stores), then one MXU matmul of depth Kc = KW*Cin, accumulated in f32.
    acc = None
    for kh in range(KH):
        for kw in range(KW):
            off = kh * dh * Wp + kw * dw
            xcol_ref[kw * Cin:(kw + 1) * Cin, :] = xflat_ref[:, off:off + P]
        wk = w_ref[:, kh * Kc:(kh + 1) * Kc]                  # (Cout, Kc) bf16
        part = lax.dot_general(
            wk, xcol_ref[...],
            dimension_numbers=(((1,), (0,)), ((), ())),
            preferred_element_type=jnp.float32)               # (Cout, P) f32
        acc = part if acc is None else acc + part

    # ---- (4) fused eval-mode BatchNorm + ReLU, drop the 2*pw gap columns ---
    y = jnp.maximum(acc * scale_ref[...] + shift_ref[...], 0.0)
    for h in range(H):
        s0 = h * Wp
        o_ref[0, :, h * W:(h + 1) * W] = y[:, s0:s0 + W]


def conv2d_block(x_nchw, w_oihw, bias, gamma, beta, running_mean, running_var,
                 dilation=(1, 1), eps=1e-5):
    """Pallas implementation of Conv2dBlock.forward (eval-mode BN)."""
    N, Cin, H, W = x_nchw.shape
    Cout, Cin_w, KH, KW = w_oihw.shape
    assert Cin == Cin_w
    dh, dw = dilation
    # PyTorch-style "same" padding; stride 1 + odd effective kernel keeps H, W.
    assert (dh * (KH - 1)) % 2 == 0 and (dw * (KW - 1)) % 2 == 0
    ph = dh * (KH - 1) // 2
    pw = dw * (KW - 1) // 2
    Hp, Wp = H + 2 * ph, W + 2 * pw
    K = KH * KW * Cin
    P = (H - 1) * Wp + W          # row-strided pixel span used by the GEMM

    # --- glue (plain JAX): only a bf16 cast + free reshapes on the input; no
    #     padding, no transposes, no output post-pass outside the kernel.
    x_flat = x_nchw.reshape(N, Cin, H * W).astype(jnp.bfloat16)
    # (Cout, Cin, KH, KW) -> (Cout, K) with K index = (kh*KW + kw)*Cin + ci,
    # matching the in-kernel im2col ordering.
    w_mat = jnp.transpose(w_oihw, (0, 2, 3, 1)).reshape(Cout, K)
    w_mat = w_mat.astype(jnp.bfloat16)

    # eval-mode BatchNorm folded into per-channel scale/shift (f32), shaped
    # (Cout, 1) so the epilogue broadcasts along the pixel lane axis.
    scale = (gamma / jnp.sqrt(running_var + eps)).astype(jnp.float32)
    shift = ((bias - running_mean) * scale + beta).astype(jnp.float32)
    scale2 = scale.reshape(Cout, 1)
    shift2 = shift.reshape(Cout, 1)

    # Per-generation VMEM budget (~75% of this core's VMEM) instead of a flat
    # cap: ~48 MiB on v7x (64 MiB VMEM), ~96 MiB on v5e/v6e (128 MiB).
    vmem_limit = 32 * 1024 * 1024
    try:
        vmem_cap = int(pltpu.get_tpu_info().vmem_capacity_bytes)
        if vmem_cap >= 64 * 1024 * 1024:
            vmem_limit = (3 * vmem_cap) // 4
    except Exception:
        pass

    kernel = functools.partial(
        _conv_bn_relu_kernel, ksize=(KH, KW), dilation=(dh, dw), pad=(ph, pw))

    out_flat = pl.pallas_call(
        kernel,
        out_shape=jax.ShapeDtypeStruct((N, Cout, H * W), jnp.float32),
        grid_spec=pltpu.PrefetchScalarGridSpec(
            num_scalar_prefetch=0,
            # TODO(synk): production grid = (N, F_tiles) with a (KH-1)*dh halo
            # per tile so input DMA for step i+1 hides behind compute.
            grid=(N,),
            in_specs=[
                pl.BlockSpec((1, Cin, H * W), lambda n: (n, 0, 0)),
                # Grid-invariant operands (constant index_map).
                # TODO(synk): at production Cout/K, single-buffer these with
                # pipeline_mode=pl.Buffered(1) to save VMEM headroom.
                pl.BlockSpec((Cout, K), lambda n: (0, 0)),
                pl.BlockSpec((Cout, 1), lambda n: (0, 0)),
                pl.BlockSpec((Cout, 1), lambda n: (0, 0)),
            ],
            out_specs=pl.BlockSpec((1, Cout, H * W), lambda n: (n, 0, 0)),
            scratch_shapes=[
                pltpu.VMEM((Cin, Hp * Wp), jnp.bfloat16),   # padded image (row-strided)
                pltpu.VMEM((KW * Cin, P), jnp.bfloat16),    # per-kh im2col chunk
            ],
        ),
        compiler_params=pltpu.CompilerParams(
            dimension_semantics=("parallel",),
            vmem_limit_bytes=vmem_limit,
        ),
    )(x_flat, w_mat, scale2, shift2)

    # (N, Cout, H*W) -> (N, Cout, H, W): pure metadata reshape (no HBM pass).
    return out_flat.reshape(N, Cout, H, W)


def _reference(x_nchw, w_oihw, bias, gamma, beta, running_mean, running_var,
               dilation=(1, 1), eps=1e-5):
    """Pure-JAX f32 reference (matches PyTorch eval-mode Conv2dBlock.forward)."""
    KH, KW = w_oihw.shape[2], w_oihw.shape[3]
    dh, dw = dilation
    ph = dh * (KH - 1) // 2
    pw = dw * (KW - 1) // 2
    y = lax.conv_general_dilated(
        x_nchw.astype(jnp.float32), w_oihw.astype(jnp.float32),
        window_strides=(1, 1), padding=((ph, ph), (pw, pw)),
        rhs_dilation=dilation,
        dimension_numbers=("NCHW", "OIHW", "NCHW"),
    )
    y = y + bias.reshape(1, -1, 1, 1)
    y = (y - running_mean.reshape(1, -1, 1, 1)) / jnp.sqrt(
        running_var.reshape(1, -1, 1, 1) + eps)
    y = y * gamma.reshape(1, -1, 1, 1) + beta.reshape(1, -1, 1, 1)
    return jnp.maximum(y, 0.0)


if __name__ == "__main__":
    # Small shapes consistent with the module: x is N x C x F x T (NCHW).
    N, C_IN, C_OUT, F_DIM, T_DIM = 2, 4, 8, 16, 16
    KH, KW = 5, 5
    DILATION = (1, 1)

    key = jax.random.PRNGKey(0)
    k_x, k_w, k_b, k_g, k_bt, k_rm, k_rv = jax.random.split(key, 7)

    x = jax.random.normal(k_x, (N, C_IN, F_DIM, T_DIM), dtype=jnp.float32)

    # Deterministic parameter init (shapes per nn.Conv2d / nn.BatchNorm2d).
    fan_in = C_IN * KH * KW
    bound = 1.0 / (fan_in ** 0.5)
    w = jax.random.uniform(k_w, (C_OUT, C_IN, KH, KW), jnp.float32, -bound, bound)
    bias = jax.random.uniform(k_b, (C_OUT,), jnp.float32, -bound, bound)
    gamma = 1.0 + 0.1 * jax.random.normal(k_g, (C_OUT,), jnp.float32)
    beta = 0.1 * jax.random.normal(k_bt, (C_OUT,), jnp.float32)
    running_mean = 0.1 * jax.random.normal(k_rm, (C_OUT,), jnp.float32)
    running_var = jnp.abs(1.0 + 0.1 * jax.random.normal(k_rv, (C_OUT,), jnp.float32))

    out = conv2d_block(x, w, bias, gamma, beta, running_mean, running_var,
                       dilation=DILATION)
    out = jax.block_until_ready(out)

    ref = _reference(x, w, bias, gamma, beta, running_mean, running_var,
                     dilation=DILATION)
    assert out.shape == (N, C_OUT, F_DIM, T_DIM), out.shape
    # Tolerance loosened vs the pure-f32 reference because the kernel's conv
    # operands are bf16 (f32 accumulation).
    assert jnp.allclose(out, ref, atol=5e-2, rtol=5e-2), float(
        jnp.max(jnp.abs(out - ref)))

    print("KERNEL_OK")
</pallas_src>

<mosaic_0001>
module attributes {stable_mosaic.version = 11 : i64} {
  func.func @_conv_bn_relu_kernel(%arg0: i32, %arg1: memref<1x4x256xbf16, #tpu.memory_space<vmem>>, %arg2: memref<8x100xbf16, #tpu.memory_space<vmem>>, %arg3: memref<8x1xf32, #tpu.memory_space<vmem>>, %arg4: memref<8x1xf32, #tpu.memory_space<vmem>>, %arg5: memref<1x8x256xf32, #tpu.memory_space<vmem>>, %arg6: memref<4x400xbf16, #tpu.memory_space<vmem>>, %arg7: memref<20x316xbf16, #tpu.memory_space<vmem>>) attributes {dimension_semantics = [#tpu.dimension_semantics<parallel>], iteration_bounds = array<i64: 2>, scalar_prefetch = 0 : i64, scratch_operands = 2 : i64, tpu.core_type = #tpu.core_type<tc>, window_params = [{transform_indices = @transform_0, window_bounds = array<i64: 1, 4, 256>}, {pipeline_mode = #tpu.pipeline_mode<synchronous>, transform_indices = @transform_1, window_bounds = array<i64: 8, 100>}, {pipeline_mode = #tpu.pipeline_mode<synchronous>, transform_indices = @transform_2, window_bounds = array<i64: 8, 1>}, {pipeline_mode = #tpu.pipeline_mode<synchronous>, transform_indices = @transform_3, window_bounds = array<i64: 8, 1>}, {transform_indices = @transform_4, window_bounds = array<i64: 1, 8, 256>}]} {
    %cst = arith.constant 0.000000e+00 : bf16
    %0 = vector.broadcast %cst : bf16 to vector<4x42xbf16>
    %c0 = arith.constant 0 : index
    %c0_0 = arith.constant 0 : index
    %1 = vector.load %arg6[%c0, %c0_0] : memref<4x400xbf16, #tpu.memory_space<vmem>>, vector<4x42xbf16>
    tpu.vector_store %arg6[%c0, %c0_0], %0 {strides = array<i32>} : memref<4x400xbf16, #tpu.memory_space<vmem>>, vector<4x42xbf16>,
    %cst_1 = arith.constant 0.000000e+00 : bf16
    %2 = vector.broadcast %cst_1 : bf16 to vector<4x4xbf16>
    %c0_2 = arith.constant 0 : index
    %c58 = arith.constant 58 : index
    %3 = vector.load %arg6[%c0_2, %c58] : memref<4x400xbf16, #tpu.memory_space<vmem>>, vector<4x4xbf16>
    tpu.vector_store %arg6[%c0_2, %c58], %2 {strides = array<i32>} : memref<4x400xbf16, #tpu.memory_space<vmem>>, vector<4x4xbf16>,
    %cst_3 = arith.constant 0.000000e+00 : bf16
    %4 = vector.broadcast %cst_3 : bf16 to vector<4x4xbf16>
    %c0_4 = arith.constant 0 : index
    %c78 = arith.constant 78 : index
    %5 = vector.load %arg6[%c0_4, %c78] : memref<4x400xbf16, #tpu.memory_space<vmem>>, vector<4x4xbf16>
    tpu.vector_store %arg6[%c0_4, %c78], %4 {strides = array<i32>} : memref<4x400xbf16, #tpu.memory_space<vmem>>, vector<4x4xbf16>,
    %cst_5 = arith.constant 0.000000e+00 : bf16
    %6 = vector.broadcast %cst_5 : bf16 to vector<4x4xbf16>
    %c0_6 = arith.constant 0 : index
    %c98 = arith.constant 98 : index
    %7 = vector.load %arg6[%c0_6, %c98] : memref<4x400xbf16, #tpu.memory_space<vmem>>, vector<4x4xbf16>
    tpu.vector_store %arg6[%c0_6, %c98], %6 {strides = array<i32>} : memref<4x400xbf16, #tpu.memory_space<vmem>>, vector<4x4xbf16>,
    %cst_7 = arith.constant 0.000000e+00 : bf16
    %8 = vector.broadcast %cst_7 : bf16 to vector<4x4xbf16>
    %c0_8 = arith.constant 0 : index
    %c118 = arith.constant 118 : index
    %9 = vector.load %arg6[%c0_8, %c118] : memref<4x400xbf16, #tpu.memory_space<vmem>>, vector<4x4xbf16>
    tpu.vector_store %arg6[%c0_8, %c118], %8 {strides = array<i32>} : memref<4x400xbf16, #tpu.memory_space<vmem>>, vector<4x4xbf16>,
    %cst_9 = arith.constant 0.000000e+00 : bf16
    %10 = vector.broadcast %cst_9 : bf16 to vector<4x4xbf16>
    %c0_10 = arith.constant 0 : index
    %c138 = arith.constant 138 : index
    %11 = vector.load %arg6[%c0_10, %c138] : memref<4x400xbf16, #tpu.memory_space<vmem>>, vector<4x4xbf16>
    tpu.vector_store %arg6[%c0_10, %c138], %10 {strides = array<i32>} : memref<4x400xbf16, #tpu.memory_space<vmem>>, vector<4x4xbf16>,
    %cst_11 = arith.constant 0.000000e+00 : bf16
    %12 = vector.broadcast %cst_11 : bf16 to vector<4x4xbf16>
    %c0_12 = arith.constant 0 : index
    %c158 = arith.constant 158 : index
    %13 = vector.load %arg6[%c0_12, %c158] : memref<4x400xbf16, #tpu.memory_space<vmem>>, vector<4x4xbf16>
    tpu.vector_store %arg6[%c0_12, %c158], %12 {strides = array<i32>} : memref<4x400xbf16, #tpu.memory_space<vmem>>, vector<4x4xbf16>,
    %cst_13 = arith.constant 0.000000e+00 : bf16
    %14 = vector.broadcast %cst_13 : bf16 to vector<4x4xbf16>
    %c0_14 = arith.constant 0 : index
    %c178 = arith.constant 178 : index
    %15 = vector.load %arg6[%c0_14, %c178] : memref<4x400xbf16, #tpu.memory_space<vmem>>, vector<4x4xbf16>
    tpu.vector_store %arg6[%c0_14, %c178], %14 {strides = array<i32>} : memref<4x400xbf16, #tpu.memory_space<vmem>>, vector<4x4xbf16>,
    %cst_15 = arith.constant 0.000000e+00 : bf16
    %16 = vector.broadcast %cst_15 : bf16 to vector<4x4xbf16>
    %c0_16 = arith.constant 0 : index
    %c198 = arith.constant 198 : index
    %17 = vector.load %arg6[%c0_16, %c198] : memref<4x400xbf16, #tpu.memory_space<vmem>>, vector<4x4xbf16>
    tpu.vector_store %arg6[%c0_16, %c198], %16 {strides = array<i32>} : memref<4x400xbf16, #tpu.memory_space<vmem>>, vector<4x4xbf16>,
    %cst_17 = arith.constant 0.000000e+00 : bf16
    %18 = vector.broadcast %cst_17 : bf16 to vector<4x4xbf16>
    %c0_18 = arith.constant 0 : index
    %c218 = arith.constant 218 : index
    %19 = vector.load %arg6[%c0_18, %c218] : memref<4x400xbf16, #tpu.memory_space<vmem>>, vector<4x4xbf16>
    tpu.vector_store %arg6[%c0_18, %c218], %18 {strides = array<i32>} : memref<4x400xbf16, #tpu.memory_space<vmem>>, vector<4x4xbf16>,
    %cst_19 = arith.constant 0.000000e+00 : bf16
    %20 = vector.broadcast %cst_19 : bf16 to vector<4x4xbf16>
    %c0_20 = arith.constant 0 : index
    %c238 = arith.constant 238 : index
    %21 = vector.load %arg6[%c0_20, %c238] : memref<4x400xbf16, #tpu.memory_space<vmem>>, vector<4x4xbf16>
    tpu.vector_store %arg6[%c0_20, %c238], %20 {strides = array<i32>} : memref<4x400xbf16, #tpu.memory_space<vmem>>, vector<4x4xbf16>,
    %cst_21 = arith.constant 0.000000e+00 : bf16
    %22 = vector.broadcast %cst_21 : bf16 to vector<4x4xbf16>
    %c0_22 = arith.constant 0 : index
    %c258 = arith.constant 258 : index
    %23 = vector.load %arg6[%c0_22, %c258] : memref<4x400xbf16, #tpu.memory_space<vmem>>, vector<4x4xbf16>
    tpu.vector_store %arg6[%c0_22, %c258], %22 {strides = array<i32>} : memref<4x400xbf16, #tpu.memory_space<vmem>>, vector<4x4xbf16>,
    %cst_23 = arith.constant 0.000000e+00 : bf16
    %24 = vector.broadcast %cst_23 : bf16 to vector<4x4xbf16>
    %c0_24 = arith.constant 0 : index
    %c278 = arith.constant 278 : index
    %25 = vector.load %arg6[%c0_24, %c278] : memref<4x400xbf16, #tpu.memory_space<vmem>>, vector<4x4xbf16>
    tpu.vector_store %arg6[%c0_24, %c278], %24 {strides = array<i32>} : memref<4x400xbf16, #tpu.memory_space<vmem>>, vector<4x4xbf16>,
    %cst_25 = arith.constant 0.000000e+00 : bf16
    %26 = vector.broadcast %cst_25 : bf16 to vector<4x4xbf16>
    %c0_26 = arith.constant 0 : index
    %c298 = arith.constant 298 : index
    %27 = vector.load %arg6[%c0_26, %c298] : memref<4x400xbf16, #tpu.memory_space<vmem>>, vector<4x4xbf16>
    tpu.vector_store %arg6[%c0_26, %c298], %26 {strides = array<i32>} : memref<4x400xbf16, #tpu.memory_space<vmem>>, vector<4x4xbf16>,
    %cst_27 = arith.constant 0.000000e+00 : bf16
    %28 = vector.broadcast %cst_27 : bf16 to vector<4x4xbf16>
    %c0_28 = arith.constant 0 : index
    %c318 = arith.constant 318 : index
    %29 = vector.load %arg6[%c0_28, %c318] : memref<4x400xbf16, #tpu.memory_space<vmem>>, vector<4x4xbf16>
    tpu.vector_store %arg6[%c0_28, %c318], %28 {strides = array<i32>} : memref<4x400xbf16, #tpu.memory_space<vmem>>, vector<4x4xbf16>,
    %cst_29 = arith.constant 0.000000e+00 : bf16
    %30 = vector.broadcast %cst_29 : bf16 to vector<4x4xbf16>
    %c0_30 = arith.constant 0 : index
    %c338 = arith.constant 338 : index
    %31 = vector.load %arg6[%c0_30, %c338] : memref<4x400xbf16, #tpu.memory_space<vmem>>, vector<4x4xbf16>
    tpu.vector_store %arg6[%c0_30, %c338], %30 {strides = array<i32>} : memref<4x400xbf16, #tpu.memory_space<vmem>>, vector<4x4xbf16>,
    %cst_31 = arith.constant 0.000000e+00 : bf16
    %32 = vector.broadcast %cst_31 : bf16 to vector<4x42xbf16>
    %c0_32 = arith.constant 0 : index
    %c358 = arith.constant 358 : index
    %33 = vector.load %arg6[%c0_32, %c358] : memref<4x400xbf16, #tpu.memory_space<vmem>>, vector<4x42xbf16>
    tpu.vector_store %arg6[%c0_32, %c358], %32 {strides = array<i32>} : memref<4x400xbf16, #tpu.memory_space<vmem>>, vector<4x42xbf16>,
    %c0_33 = arith.constant 0 : index
    %c0_34 = arith.constant 0 : index
    %c0_35 = arith.constant 0 : index
    %34 = vector.load %arg1[%c0_33, %c0_34, %c0_35] : memref<1x4x256xbf16, #tpu.memory_space<vmem>>, vector<1x4x16xbf16>
    %35 = vector.shape_cast %34 : vector<1x4x16xbf16> to vector<4x16xbf16>
    %c0_36 = arith.constant 0 : index
    %c42 = arith.constant 42 : index
    %36 = vector.load %arg6[%c0_36, %c42] : memref<4x400xbf16, #tpu.memory_space<vmem>>, vector<4x16xbf16>
    tpu.vector_store %arg6[%c0_36, %c42], %35 {strides = array<i32>} : memref<4x400xbf16, #tpu.memory_space<vmem>>, vector<4x16xbf16>,
    %c0_37 = arith.constant 0 : index
    %c0_38 = arith.constant 0 : index
    %c16 = arith.constant 16 : index
    %37 = vector.load %arg1[%c0_37, %c0_38, %c16] : memref<1x4x256xbf16, #tpu.memory_space<vmem>>, vector<1x4x16xbf16>
    %38 = vector.shape_cast %37 : vector<1x4x16xbf16> to vector<4x16xbf16>
    %c0_39 = arith.constant 0 : index
    %c62 = arith.constant 62 : index
    %39 = vector.load %arg6[%c0_39, %c62] : memref<4x400xbf16, #tpu.memory_space<vmem>>, vector<4x16xbf16>
    tpu.vector_store %arg6[%c0_39, %c62], %38 {strides = array<i32>} : memref<4x400xbf16, #tpu.memory_space<vmem>>, vector<4x16xbf16>,
    %c0_40 = arith.constant 0 : index
    %c0_41 = arith.constant 0 : index
    %c32 = arith.constant 32 : index
    %40 = vector.load %arg1[%c0_40, %c0_41, %c32] : memref<1x4x256xbf16, #tpu.memory_space<vmem>>, vector<1x4x16xbf16>
    %41 = vector.shape_cast %40 : vector<1x4x16xbf16> to vector<4x16xbf16>
    %c0_42 = arith.constant 0 : index
    %c82 = arith.constant 82 : index
    %42 = vector.load %arg6[%c0_42, %c82] : memref<4x400xbf16, #tpu.memory_space<vmem>>, vector<4x16xbf16>
    tpu.vector_store %arg6[%c0_42, %c82], %41 {strides = array<i32>} : memref<4x400xbf16, #tpu.memory_space<vmem>>, vector<4x16xbf16>,
    %c0_43 = arith.constant 0 : index
    %c0_44 = arith.constant 0 : index
    %c48 = arith.constant 48 : index
    %43 = vector.load %arg1[%c0_43, %c0_44, %c48] : memref<1x4x256xbf16, #tpu.memory_space<vmem>>, vector<1x4x16xbf16>
    %44 = vector.shape_cast %43 : vector<1x4x16xbf16> to vector<4x16xbf16>
    %c0_45 = arith.constant 0 : index
    %c102 = arith.constant 102 : index
    %45 = vector.load %arg6[%c0_45, %c102] : memref<4x400xbf16, #tpu.memory_space<vmem>>, vector<4x16xbf16>
    tpu.vector_store %arg6[%c0_45, %c102], %44 {strides = array<i32>} : memref<4x400xbf16, #tpu.memory_space<vmem>>, vector<4x16xbf16>,
    %c0_46 = arith.constant 0 : index
    %c0_47 = arith.constant 0 : index
    %c64 = arith.constant 64 : index
    %46 = vector.load %arg1[%c0_46, %c0_47, %c64] : memref<1x4x256xbf16, #tpu.memory_space<vmem>>, vector<1x4x16xbf16>
    %47 = vector.shape_cast %46 : vector<1x4x16xbf16> to vector<4x16xbf16>
    %c0_48 = arith.constant 0 : index
    %c122 = arith.constant 122 : index
    %48 = vector.load %arg6[%c0_48, %c122] : memref<4x400xbf16, #tpu.memory_space<vmem>>, vector<4x16xbf16>
    tpu.vector_store %arg6[%c0_48, %c122], %47 {strides = array<i32>} : memref<4x400xbf16, #tpu.memory_space<vmem>>, vector<4x16xbf16>,
    %c0_49 = arith.constant 0 : index
    %c0_50 = arith.constant 0 : index
    %c80 = arith.constant 80 : index
    %49 = vector.load %arg1[%c0_49, %c0_50, %c80] : memref<1x4x256xbf16, #tpu.memory_space<vmem>>, vector<1x4x16xbf16>
    %50 = vector.shape_cast %49 : vector<1x4x16xbf16> to vector<4x16xbf16>
    %c0_51 = arith.constant 0 : index
    %c142 = arith.constant 142 : index
    %51 = vector.load %arg6[%c0_51, %c142] : memref<4x400xbf16, #tpu.memory_space<vmem>>, vector<4x16xbf16>
    tpu.vector_store %arg6[%c0_51, %c142], %50 {strides = array<i32>} : memref<4x400xbf16, #tpu.memory_space<vmem>>, vector<4x16xbf16>,
    %c0_52 = arith.constant 0 : index
    %c0_53 = arith.constant 0 : index
    %c96 = arith.constant 96 : index
    %52 = vector.load %arg1[%c0_52, %c0_53, %c96] : memref<1x4x256xbf16, #tpu.memory_space<vmem>>, vector<1x4x16xbf16>
    %53 = vector.shape_cast %52 : vector<1x4x16xbf16> to vector<4x16xbf16>
    %c0_54 = arith.constant 0 : index
    %c162 = arith.constant 162 : index
    %54 = vector.load %arg6[%c0_54, %c162] : memref<4x400xbf16, #tpu.memory_space<vmem>>, vector<4x16xbf16>
    tpu.vector_store %arg6[%c0_54, %c162], %53 {strides = array<i32>} : memref<4x400xbf16, #tpu.memory_space<vmem>>, vector<4x16xbf16>,
    %c0_55 = arith.constant 0 : index
    %c0_56 = arith.constant 0 : index
    %c112 = arith.constant 112 : index
    %55 = vector.load %arg1[%c0_55, %c0_56, %c112] : memref<1x4x256xbf16, #tpu.memory_space<vmem>>, vector<1x4x16xbf16>
    %56 = vector.shape_cast %55 : vector<1x4x16xbf16> to vector<4x16xbf16>
    %c0_57 = arith.constant 0 : index
    %c182 = arith.constant 182 : index
    %57 = vector.load %arg6[%c0_57, %c182] : memref<4x400xbf16, #tpu.memory_space<vmem>>, vector<4x16xbf16>
    tpu.vector_store %arg6[%c0_57, %c182], %56 {strides = array<i32>} : memref<4x400xbf16, #tpu.memory_space<vmem>>, vector<4x16xbf16>,
    %c0_58 = arith.constant 0 : index
    %c0_59 = arith.constant 0 : index
    %c128 = arith.constant 128 : index
    %58 = vector.load %arg1[%c0_58, %c0_59, %c128] : memref<1x4x256xbf16, #tpu.memory_space<vmem>>, vector<1x4x16xbf16>
    %59 = vector.shape_cast %58 : vector<1x4x16xbf16> to vector<4x16xbf16>
    %c0_60 = arith.constant 0 : index
    %c202 = arith.constant 202 : index
    %60 = vector.load %arg6[%c0_60, %c202] : memref<4x400xbf16, #tpu.memory_space<vmem>>, vector<4x16xbf16>
    tpu.vector_store %arg6[%c0_60, %c202], %59 {strides = array<i32>} : memref<4x400xbf16, #tpu.memory_space<vmem>>, vector<4x16xbf16>,
    %c0_61 = arith.constant 0 : index
    %c0_62 = arith.constant 0 : index
    %c144 = arith.constant 144 : index
    %61 = vector.load %arg1[%c0_61, %c0_62, %c144] : memref<1x4x256xbf16, #tpu.memory_space<vmem>>, vector<1x4x16xbf16>
    %62 = vector.shape_cast %61 : vector<1x4x16xbf16> to vector<4x16xbf16>
    %c0_63 = arith.constant 0 : index
    %c222 = arith.constant 222 : index
    %63 = vector.load %arg6[%c0_63, %c222] : memref<4x400xbf16, #tpu.memory_space<vmem>>, vector<4x16xbf16>
    tpu.vector_store %arg6[%c0_63, %c222], %62 {strides = array<i32>} : memref<4x400xbf16, #tpu.memory_space<vmem>>, vector<4x16xbf16>,
    %c0_64 = arith.constant 0 : index
    %c0_65 = arith.constant 0 : index
    %c160 = arith.constant 160 : index
    %64 = vector.load %arg1[%c0_64, %c0_65, %c160] : memref<1x4x256xbf16, #tpu.memory_space<vmem>>, vector<1x4x16xbf16>
    %65 = vector.shape_cast %64 : vector<1x4x16xbf16> to vector<4x16xbf16>
    %c0_66 = arith.constant 0 : index
    %c242 = arith.constant 242 : index
    %66 = vector.load %arg6[%c0_66, %c242] : memref<4x400xbf16, #tpu.memory_space<vmem>>, vector<4x16xbf16>
    tpu.vector_store %arg6[%c0_66, %c242], %65 {strides = array<i32>} : memref<4x400xbf16, #tpu.memory_space<vmem>>, vector<4x16xbf16>,
    %c0_67 = arith.constant 0 : index
    %c0_68 = arith.constant 0 : index
    %c176 = arith.constant 176 : index
    %67 = vector.load %arg1[%c0_67, %c0_68, %c176] : memref<1x4x256xbf16, #tpu.memory_space<vmem>>, vector<1x4x16xbf16>
    %68 = vector.shape_cast %67 : vector<1x4x16xbf16> to vector<4x16xbf16>
    %c0_69 = arith.constant 0 : index
    %c262 = arith.constant 262 : index
    %69 = vector.load %arg6[%c0_69, %c262] : memref<4x400xbf16, #tpu.memory_space<vmem>>, vector<4x16xbf16>
    tpu.vector_store %arg6[%c0_69, %c262], %68 {strides = array<i32>} : memref<4x400xbf16, #tpu.memory_space<vmem>>, vector<4x16xbf16>,
    %c0_70 = arith.constant 0 : index
    %c0_71 = arith.constant 0 : index
    %c192 = arith.constant 192 : index
    %70 = vector.load %arg1[%c0_70, %c0_71, %c192] : memref<1x4x256xbf16, #tpu.memory_space<vmem>>, vector<1x4x16xbf16>
    %71 = vector.shape_cast %70 : vector<1x4x16xbf16> to vector<4x16xbf16>
    %c0_72 = arith.constant 0 : index
    %c282 = arith.constant 282 : index
    %72 = vector.load %arg6[%c0_72, %c282] : memref<4x400xbf16, #tpu.memory_space<vmem>>, vector<4x16xbf16>
    tpu.vector_store %arg6[%c0_72, %c282], %71 {strides = array<i32>} : memref<4x400xbf16, #tpu.memory_space<vmem>>, vector<4x16xbf16>,
    %c0_73 = arith.constant 0 : index
    %c0_74 = arith.constant 0 : index
    %c208 = arith.constant 208 : index
    %73 = vector.load %arg1[%c0_73, %c0_74, %c208] : memref<1x4x256xbf16, #tpu.memory_space<vmem>>, vector<1x4x16xbf16>
    %74 = vector.shape_cast %73 : vector<1x4x16xbf16> to vector<4x16xbf16>
    %c0_75 = arith.constant 0 : index
    %c302 = arith.constant 302 : index
    %75 = vector.load %arg6[%c0_75, %c302] : memref<4x400xbf16, #tpu.memory_space<vmem>>, vector<4x16xbf16>
    tpu.vector_store %arg6[%c0_75, %c302], %74 {strides = array<i32>} : memref<4x400xbf16, #tpu.memory_space<vmem>>, vector<4x16xbf16>,
    %c0_76 = arith.constant 0 : index
    %c0_77 = arith.constant 0 : index
    %c224 = arith.constant 224 : index
    %76 = vector.load %arg1[%c0_76, %c0_77, %c224] : memref<1x4x256xbf16, #tpu.memory_space<vmem>>, vector<1x4x16xbf16>
    %77 = vector.shape_cast %76 : vector<1x4x16xbf16> to vector<4x16xbf16>
    %c0_78 = arith.constant 0 : index
    %c322 = arith.constant 322 : index
    %78 = vector.load %arg6[%c0_78, %c322] : memref<4x400xbf16, #tpu.memory_space<vmem>>, vector<4x16xbf16>
    tpu.vector_store %arg6[%c0_78, %c322], %77 {strides = array<i32>} : memref<4x400xbf16, #tpu.memory_space<vmem>>, vector<4x16xbf16>,
    %c0_79 = arith.constant 0 : index
    %c0_80 = arith.constant 0 : index
    %c240 = arith.constant 240 : index
    %79 = vector.load %arg1[%c0_79, %c0_80, %c240] : memref<1x4x256xbf16, #tpu.memory_space<vmem>>, vector<1x4x16xbf16>
    %80 = vector.shape_cast %79 : vector<1x4x16xbf16> to vector<4x16xbf16>
    %c0_81 = arith.constant 0 : index
    %c342 = arith.constant 342 : index
    %81 = vector.load %arg6[%c0_81, %c342] : memref<4x400xbf16, #tpu.memory_space<vmem>>, vector<4x16xbf16>
    tpu.vector_store %arg6[%c0_81, %c342], %80 {strides = array<i32>} : memref<4x400xbf16, #tpu.memory_space<vmem>>, vector<4x16xbf16>,
    %c0_82 = arith.constant 0 : index
    %c0_83 = arith.constant 0 : index
    %82 = vector.load %arg6[%c0_82, %c0_83] : memref<4x400xbf16, #tpu.memory_space<vmem>>, vector<4x316xbf16>
    %c0_84 = arith.constant 0 : index
    %c0_85 = arith.constant 0 : index
    %83 = vector.load %arg7[%c0_84, %c0_85] : memref<20x316xbf16, #tpu.memory_space<vmem>>, vector<4x316xbf16>
    tpu.vector_store %arg7[%c0_84, %c0_85], %82 {strides = array<i32>} : memref<20x316xbf16, #tpu.memory_space<vmem>>, vector<4x316xbf16>,
    %c0_86 = arith.constant 0 : index
    %c1 = arith.constant 1 : index
    %84 = vector.load %arg6[%c0_86, %c1] : memref<4x400xbf16, #tpu.memory_space<vmem>>, vector<4x316xbf16>
    %c4 = arith.constant 4 : index
    %c0_87 = arith.constant 0 : index
    %85 = vector.load %arg7[%c4, %c0_87] : memref<20x316xbf16, #tpu.memory_space<vmem>>, vector<4x316xbf16>
    tpu.vector_store %arg7[%c4, %c0_87], %84 {strides = array<i32>} : memref<20x316xbf16, #tpu.memory_space<vmem>>, vector<4x316xbf16>,
    %c0_88 = arith.constant 0 : index
    %c2 = arith.constant 2 : index
    %86 = vector.load %arg6[%c0_88, %c2] : memref<4x400xbf16, #tpu.memory_space<vmem>>, vector<4x316xbf16>
    %c8 = arith.constant 8 : index
    %c0_89 = arith.constant 0 : index
    %87 = vector.load %arg7[%c8, %c0_89] : memref<20x316xbf16, #tpu.memory_space<vmem>>, vector<4x316xbf16>
    tpu.vector_store %arg7[%c8, %c0_89], %86 {strides = array<i32>} : memref<20x316xbf16, #tpu.memory_space<vmem>>, vector<4x316xbf16>,
    %c0_90 = arith.constant 0 : index
    %c3 = arith.constant 3 : index
    %88 = vector.load %arg6[%c0_90, %c3] : memref<4x400xbf16, #tpu.memory_space<vmem>>, vector<4x316xbf16>
    %c12 = arith.constant 12 : index
    %c0_91 = arith.constant 0 : index
    %89 = vector.load %arg7[%c12, %c0_91] : memref<20x316xbf16, #tpu.memory_space<vmem>>, vector<4x316xbf16>
    tpu.vector_store %arg7[%c12, %c0_91], %88 {strides = array<i32>} : memref<20x316xbf16, #tpu.memory_space<vmem>>, vector<4x316xbf16>,
    %c0_92 = arith.constant 0 : index
    %c4_93 = arith.constant 4 : index
    %90 = vector.load %arg6[%c0_92, %c4_93] : memref<4x400xbf16, #tpu.memory_space<vmem>>, vector<4x316xbf16>
    %c16_94 = arith.constant 16 : index
    %c0_95 = arith.constant 0 : index
    %91 = vector.load %arg7[%c16_94, %c0_95] : memref<20x316xbf16, #tpu.memory_space<vmem>>, vector<4x316xbf16>
    tpu.vector_store %arg7[%c16_94, %c0_95], %90 {strides = array<i32>} : memref<20x316xbf16, #tpu.memory_space<vmem>>, vector<4x316xbf16>,
    %c0_96 = arith.constant 0 : index
    %c0_97 = arith.constant 0 : index
    %92 = vector.load %arg2[%c0_96, %c0_97] : memref<8x100xbf16, #tpu.memory_space<vmem>>, vector<8x20xbf16>
    %c0_98 = arith.constant 0 : index
    %c0_99 = arith.constant 0 : index
    %93 = vector.load %arg7[%c0_98, %c0_99] : memref<20x316xbf16, #tpu.memory_space<vmem>>, vector<20x316xbf16>
    %cst_100 = arith.constant dense<0.000000e+00> : vector<8x316xf32>
    %94 = tpu.matmul %92, %93, %cst_100 {dimension_numbers = #tpu.dot_dimension_numbers<[1], [0], [0], [1], [0, 0, 1, 1], [], []>} : vector<8x20xbf16>, vector<20x316xbf16>, vector<8x316xf32> -> vector<8x316xf32>
    %c0_101 = arith.constant 0 : index
    %c20 = arith.constant 20 : index
    %95 = vector.load %arg6[%c0_101, %c20] : memref<4x400xbf16, #tpu.memory_space<vmem>>, vector<4x316xbf16>
    %c0_102 = arith.constant 0 : index
    %c0_103 = arith.constant 0 : index
    %96 = vector.load %arg7[%c0_102, %c0_103] : memref<20x316xbf16, #tpu.memory_space<vmem>>, vector<4x316xbf16>
    tpu.vector_store %arg7[%c0_102, %c0_103], %95 {strides = array<i32>} : memref<20x316xbf16, #tpu.memory_space<vmem>>, vector<4x316xbf16>,
    %c0_104 = arith.constant 0 : index
    %c21 = arith.constant 21 : index
    %97 = vector.load %arg6[%c0_104, %c21] : memref<4x400xbf16, #tpu.memory_space<vmem>>, vector<4x316xbf16>
    %c4_105 = arith.constant 4 : index
    %c0_106 = arith.constant 0 : index
    %98 = vector.load %arg7[%c4_105, %c0_106] : memref<20x316xbf16, #tpu.memory_space<vmem>>, vector<4x316xbf16>
    tpu.vector_store %arg7[%c4_105, %c0_106], %97 {strides = array<i32>} : memref<20x316xbf16, #tpu.memory_space<vmem>>, vector<4x316xbf16>,
    %c0_107 = arith.constant 0 : index
    %c22 = arith.constant 22 : index
    %99 = vector.load %arg6[%c0_107, %c22] : memref<4x400xbf16, #tpu.memory_space<vmem>>, vector<4x316xbf16>
    %c8_108 = arith.constant 8 : index
    %c0_109 = arith.constant 0 : index
    %100 = vector.load %arg7[%c8_108, %c0_109] : memref<20x316xbf16, #tpu.memory_space<vmem>>, vector<4x316xbf16>
    tpu.vector_store %arg7[%c8_108, %c0_109], %99 {strides = array<i32>} : memref<20x316xbf16, #tpu.memory_space<vmem>>, vector<4x316xbf16>,
    %c0_110 = arith.constant 0 : index
    %c23 = arith.constant 23 : index
    %101 = vector.load %arg6[%c0_110, %c23] : memref<4x400xbf16, #tpu.memory_space<vmem>>, vector<4x316xbf16>
    %c12_111 = arith.constant 12 : index
    %c0_112 = arith.constant 0 : index
    %102 = vector.load %arg7[%c12_111, %c0_112] : memref<20x316xbf16, #tpu.memory_space<vmem>>, vector<4x316xbf16>
    tpu.vector_store %arg7[%c12_111, %c0_112], %101 {strides = array<i32>} : memref<20x316xbf16, #tpu.memory_space<vmem>>, vector<4x316xbf16>,
    %c0_113 = arith.constant 0 : index
    %c24 = arith.constant 24 : index
    %103 = vector.load %arg6[%c0_113, %c24] : memref<4x400xbf16, #tpu.memory_space<vmem>>, vector<4x316xbf16>
    %c16_114 = arith.constant 16 : index
    %c0_115 = arith.constant 0 : index
    %104 = vector.load %arg7[%c16_114, %c0_115] : memref<20x316xbf16, #tpu.memory_space<vmem>>, vector<4x316xbf16>
    tpu.vector_store %arg7[%c16_114, %c0_115], %103 {strides = array<i32>} : memref<20x316xbf16, #tpu.memory_space<vmem>>, vector<4x316xbf16>,
    %c0_116 = arith.constant 0 : index
    %c20_117 = arith.constant 20 : index
    %105 = vector.load %arg2[%c0_116, %c20_117] : memref<8x100xbf16, #tpu.memory_space<vmem>>, vector<8x20xbf16>
    %c0_118 = arith.constant 0 : index
    %c0_119 = arith.constant 0 : index
    %106 = vector.load %arg7[%c0_118, %c0_119] : memref<20x316xbf16, #tpu.memory_space<vmem>>, vector<20x316xbf16>
    %cst_120 = arith.constant dense<0.000000e+00> : vector<8x316xf32>
    %107 = tpu.matmul %105, %106, %cst_120 {dimension_numbers = #tpu.dot_dimension_numbers<[1], [0], [0], [1], [0, 0, 1, 1], [], []>} : vector<8x20xbf16>, vector<20x316xbf16>, vector<8x316xf32> -> vector<8x316xf32>
    %108 = arith.addf %94, %107 : vector<8x316xf32>
    %c0_121 = arith.constant 0 : index
    %c40 = arith.constant 40 : index
    %109 = vector.load %arg6[%c0_121, %c40] : memref<4x400xbf16, #tpu.memory_space<vmem>>, vector<4x316xbf16>
    %c0_122 = arith.constant 0 : index
    %c0_123 = arith.constant 0 : index
    %110 = vector.load %arg7[%c0_122, %c0_123] : memref<20x316xbf16, #tpu.memory_space<vmem>>, vector<4x316xbf16>
    tpu.vector_store %arg7[%c0_122, %c0_123], %109 {strides = array<i32>} : memref<20x316xbf16, #tpu.memory_space<vmem>>, vector<4x316xbf16>,
    %c0_124 = arith.constant 0 : index
    %c41 = arith.constant 41 : index
    %111 = vector.load %arg6[%c0_124, %c41] : memref<4x400xbf16, #tpu.memory_space<vmem>>, vector<4x316xbf16>
    %c4_125 = arith.constant 4 : index
    %c0_126 = arith.constant 0 : index
    %112 = vector.load %arg7[%c4_125, %c0_126] : memref<20x316xbf16, #tpu.memory_space<vmem>>, vector<4x316xbf16>
    tpu.vector_store %arg7[%c4_125, %c0_126], %111 {strides = array<i32>} : memref<20x316xbf16, #tpu.memory_space<vmem>>, vector<4x316xbf16>,
    %c0_127 = arith.constant 0 : index
    %c42_128 = arith.constant 42 : index
    %113 = vector.load %arg6[%c0_127, %c42_128] : memref<4x400xbf16, #tpu.memory_space<vmem>>, vector<4x316xbf16>
    %c8_129 = arith.constant 8 : index
    %c0_130 = arith.constant 0 : index
    %114 = vector.load %arg7[%c8_129, %c0_130] : memref<20x316xbf16, #tpu.memory_space<vmem>>, vector<4x316xbf16>
    tpu.vector_store %arg7[%c8_129, %c0_130], %113 {strides = array<i32>} : memref<20x316xbf16, #tpu.memory_space<vmem>>, vector<4x316xbf16>,
    %c0_131 = arith.constant 0 : index
    %c43 = arith.constant 43 : index
    %115 = vector.load %arg6[%c0_131, %c43] : memref<4x400xbf16, #tpu.memory_space<vmem>>, vector<4x316xbf16>
    %c12_132 = arith.constant 12 : index
    %c0_133 = arith.constant 0 : index
    %116 = vector.load %arg7[%c12_132, %c0_133] : memref<20x316xbf16, #tpu.memory_space<vmem>>, vector<4x316xbf16>
    tpu.vector_store %arg7[%c12_132, %c0_133], %115 {strides = array<i32>} : memref<20x316xbf16, #tpu.memory_space<vmem>>, vector<4x316xbf16>,
    %c0_134 = arith.constant 0 : index
    %c44 = arith.constant 44 : index
    %117 = vector.load %arg6[%c0_134, %c44] : memref<4x400xbf16, #tpu.memory_space<vmem>>, vector<4x316xbf16>
    %c16_135 = arith.constant 16 : index
    %c0_136 = arith.constant 0 : index
    %118 = vector.load %arg7[%c16_135, %c0_136] : memref<20x316xbf16, #tpu.memory_space<vmem>>, vector<4x316xbf16>
    tpu.vector_store %arg7[%c16_135, %c0_136], %117 {strides = array<i32>} : memref<20x316xbf16, #tpu.memory_space<vmem>>, vector<4x316xbf16>,
    %c0_137 = arith.constant 0 : index
    %c40_138 = arith.constant 40 : index
    %119 = vector.load %arg2[%c0_137, %c40_138] : memref<8x100xbf16, #tpu.memory_space<vmem>>, vector<8x20xbf16>
    %c0_139 = arith.constant 0 : index
    %c0_140 = arith.constant 0 : index
    %120 = vector.load %arg7[%c0_139, %c0_140] : memref<20x316xbf16, #tpu.memory_space<vmem>>, vector<20x316xbf16>
    %cst_141 = arith.constant dense<0.000000e+00> : vector<8x316xf32>
    %121 = tpu.matmul %119, %120, %cst_141 {dimension_numbers = #tpu.dot_dimension_numbers<[1], [0], [0], [1], [0, 0, 1, 1], [], []>} : vector<8x20xbf16>, vector<20x316xbf16>, vector<8x316xf32> -> vector<8x316xf32>
    %122 = arith.addf %108, %121 : vector<8x316xf32>
    %c0_142 = arith.constant 0 : index
    %c60 = arith.constant 60 : index
    %123 = vector.load %arg6[%c0_142, %c60] : memref<4x400xbf16, #tpu.memory_space<vmem>>, vector<4x316xbf16>
    %c0_143 = arith.constant 0 : index
    %c0_144 = arith.constant 0 : index
    %124 = vector.load %arg7[%c0_143, %c0_144] : memref<20x316xbf16, #tpu.memory_space<vmem>>, vector<4x316xbf16>
    tpu.vector_store %arg7[%c0_143, %c0_144], %123 {strides = array<i32>} : memref<20x316xbf16, #tpu.memory_space<vmem>>, vector<4x316xbf16>,
    %c0_145 = arith.constant 0 : index
    %c61 = arith.constant 61 : index
    %125 = vector.load %arg6[%c0_145, %c61] : memref<4x400xbf16, #tpu.memory_space<vmem>>, vector<4x316xbf16>
    %c4_146 = arith.constant 4 : index
    %c0_147 = arith.constant 0 : index
    %126 = vector.load %arg7[%c4_146, %c0_147] : memref<20x316xbf16, #tpu.memory_space<vmem>>, vector<4x316xbf16>
    tpu.vector_store %arg7[%c4_146, %c0_147], %125 {strides = array<i32>} : memref<20x316xbf16, #tpu.memory_space<vmem>>, vector<4x316xbf16>,
    %c0_148 = arith.constant 0 : index
    %c62_149 = arith.constant 62 : index
    %127 = vector.load %arg6[%c0_148, %c62_149] : memref<4x400xbf16, #tpu.memory_space<vmem>>, vector<4x316xbf16>
    %c8_150 = arith.constant 8 : index
    %c0_151 = arith.constant 0 : index
    %128 = vector.load %arg7[%c8_150, %c0_151] : memref<20x316xbf16, #tpu.memory_space<vmem>>, vector<4x316xbf16>
    tpu.vector_store %arg7[%c8_150, %c0_151], %127 {strides = array<i32>} : memref<20x316xbf16, #tpu.memory_space<vmem>>, vector<4x316xbf16>,
    %c0_152 = arith.constant 0 : index
    %c63 = arith.constant 63 : index
    %129 = vector.load %arg6[%c0_152, %c63] : memref<4x400xbf16, #tpu.memory_space<vmem>>, vector<4x316xbf16>
    %c12_153 = arith.constant 12 : index
    %c0_154 = arith.constant 0 : index
    %130 = vector.load %arg7[%c12_153, %c0_154] : memref<20x316xbf16, #tpu.memory_space<vmem>>, vector<4x316xbf16>
    tpu.vector_store %arg7[%c12_153, %c0_154], %129 {strides = array<i32>} : memref<20x316xbf16, #tpu.memory_space<vmem>>, vector<4x316xbf16>,
    %c0_155 = arith.constant 0 : index
    %c64_156 = arith.constant 64 : index
    %131 = vector.load %arg6[%c0_155, %c64_156] : memref<4x400xbf16, #tpu.memory_space<vmem>>, vector<4x316xbf16>
    %c16_157 = arith.constant 16 : index
    %c0_158 = arith.constant 0 : index
    %132 = vector.load %arg7[%c16_157, %c0_158] : memref<20x316xbf16, #tpu.memory_space<vmem>>, vector<4x316xbf16>
    tpu.vector_store %arg7[%c16_157, %c0_158], %131 {strides = array<i32>} : memref<20x316xbf16, #tpu.memory_space<vmem>>, vector<4x316xbf16>,
    %c0_159 = arith.constant 0 : index
    %c60_160 = arith.constant 60 : index
    %133 = vector.load %arg2[%c0_159, %c60_160] : memref<8x100xbf16, #tpu.memory_space<vmem>>, vector<8x20xbf16>
    %c0_161 = arith.constant 0 : index
    %c0_162 = arith.constant 0 : index
    %134 = vector.load %arg7[%c0_161, %c0_162] : memref<20x316xbf16, #tpu.memory_space<vmem>>, vector<20x316xbf16>
    %cst_163 = arith.constant dense<0.000000e+00> : vector<8x316xf32>
    %135 = tpu.matmul %133, %134, %cst_163 {dimension_numbers = #tpu.dot_dimension_numbers<[1], [0], [0], [1], [0, 0, 1, 1], [], []>} : vector<8x20xbf16>, vector<20x316xbf16>, vector<8x316xf32> -> vector<8x316xf32>
    %136 = arith.addf %122, %135 : vector<8x316xf32>
    %c0_164 = arith.constant 0 : index
    %c80_165 = arith.constant 80 : index
    %137 = vector.load %arg6[%c0_164, %c80_165] : memref<4x400xbf16, #tpu.memory_space<vmem>>, vector<4x316xbf16>
    %c0_166 = arith.constant 0 : index
    %c0_167 = arith.constant 0 : index
    %138 = vector.load %arg7[%c0_166, %c0_167] : memref<20x316xbf16, #tpu.memory_space<vmem>>, vector<4x316xbf16>
    tpu.vector_store %arg7[%c0_166, %c0_167], %137 {strides = array<i32>} : memref<20x316xbf16, #tpu.memory_space<vmem>>, vector<4x316xbf16>,
    %c0_168 = arith.constant 0 : index
    %c81 = arith.constant 81 : index
    %139 = vector.load %arg6[%c0_168, %c81] : memref<4x400xbf16, #tpu.memory_space<vmem>>, vector<4x316xbf16>
    %c4_169 = arith.constant 4 : index
    %c0_170 = arith.constant 0 : index
    %140 = vector.load %arg7[%c4_169, %c0_170] : memref<20x316xbf16, #tpu.memory_space<vmem>>, vector<4x316xbf16>
    tpu.vector_store %arg7[%c4_169, %c0_170], %139 {strides = array<i32>} : memref<20x316xbf16, #tpu.memory_space<vmem>>, vector<4x316xbf16>,
    %c0_171 = arith.constant 0 : index
    %c82_172 = arith.constant 82 : index
    %141 = vector.load %arg6[%c0_171, %c82_172] : memref<4x400xbf16, #tpu.memory_space<vmem>>, vector<4x316xbf16>
    %c8_173 = arith.constant 8 : index
    %c0_174 = arith.constant 0 : index
    %142 = vector.load %arg7[%c8_173, %c0_174] : memref<20x316xbf16, #tpu.memory_space<vmem>>, vector<4x316xbf16>
    tpu.vector_store %arg7[%c8_173, %c0_174], %141 {strides = array<i32>} : memref<20x316xbf16, #tpu.memory_space<vmem>>, vector<4x316xbf16>,
    %c0_175 = arith.constant 0 : index
    %c83 = arith.constant 83 : index
    %143 = vector.load %arg6[%c0_175, %c83] : memref<4x400xbf16, #tpu.memory_space<vmem>>, vector<4x316xbf16>
    %c12_176 = arith.constant 12 : index
    %c0_177 = arith.constant 0 : index
    %144 = vector.load %arg7[%c12_176, %c0_177] : memref<20x316xbf16, #tpu.memory_space<vmem>>, vector<4x316xbf16>
    tpu.vector_store %arg7[%c12_176, %c0_177], %143 {strides = array<i32>} : memref<20x316xbf16, #tpu.memory_space<vmem>>, vector<4x316xbf16>,
    %c0_178 = arith.constant 0 : index
    %c84 = arith.constant 84 : index
    %145 = vector.load %arg6[%c0_178, %c84] : memref<4x400xbf16, #tpu.memory_space<vmem>>, vector<4x316xbf16>
    %c16_179 = arith.constant 16 : index
    %c0_180 = arith.constant 0 : index
    %146 = vector.load %arg7[%c16_179, %c0_180] : memref<20x316xbf16, #tpu.memory_space<vmem>>, vector<4x316xbf16>
    tpu.vector_store %arg7[%c16_179, %c0_180], %145 {strides = array<i32>} : memref<20x316xbf16, #tpu.memory_space<vmem>>, vector<4x316xbf16>,
    %c0_181 = arith.constant 0 : index
    %c80_182 = arith.constant 80 : index
    %147 = vector.load %arg2[%c0_181, %c80_182] : memref<8x100xbf16, #tpu.memory_space<vmem>>, vector<8x20xbf16>
    %c0_183 = arith.constant 0 : index
    %c0_184 = arith.constant 0 : index
    %148 = vector.load %arg7[%c0_183, %c0_184] : memref<20x316xbf16, #tpu.memory_space<vmem>>, vector<20x316xbf16>
    %cst_185 = arith.constant dense<0.000000e+00> : vector<8x316xf32>
    %149 = tpu.matmul %147, %148, %cst_185 {dimension_numbers = #tpu.dot_dimension_numbers<[1], [0], [0], [1], [0, 0, 1, 1], [], []>} : vector<8x20xbf16>, vector<20x316xbf16>, vector<8x316xf32> -> vector<8x316xf32>
    %150 = arith.addf %136, %149 : vector<8x316xf32>
    %c0_186 = arith.constant 0 : index
    %c0_187 = arith.constant 0 : index
    %151 = vector.load %arg3[%c0_186, %c0_187] : memref<8x1xf32, #tpu.memory_space<vmem>>, vector<8x1xf32>
    %152 = vector.broadcast %151 : vector<8x1xf32> to vector<8x316xf32>
    %153 = arith.mulf %150, %152 : vector<8x316xf32>
    %c0_188 = arith.constant 0 : index
    %c0_189 = arith.constant 0 : index
    %154 = vector.load %arg4[%c0_188, %c0_189] : memref<8x1xf32, #tpu.memory_space<vmem>>, vector<8x1xf32>
    %155 = vector.broadcast %154 : vector<8x1xf32> to vector<8x316xf32>
    %156 = arith.addf %153, %155 : vector<8x316xf32>
    %cst_190 = arith.constant 0.000000e+00 : f32
    %157 = vector.broadcast %cst_190 : f32 to vector<8x316xf32>
    %158 = arith.maximumf %156, %157 : vector<8x316xf32>
    %159 = vector.extract_strided_slice %158 {offsets = [0, 0], sizes = [8, 16], strides = [1, 1]} : vector<8x316xf32> to vector<8x16xf32>
    %c0_191 = arith.constant 0 : index
    %c0_192 = arith.constant 0 : index
    %c0_193 = arith.constant 0 : index
    %160 = vector.load %arg5[%c0_191, %c0_192, %c0_193] : memref<1x8x256xf32, #tpu.memory_space<vmem>>, vector<1x8x16xf32>
    %161 = vector.shape_cast %160 : vector<1x8x16xf32> to vector<8x16xf32>
    %162 = vector.shape_cast %159 : vector<8x16xf32> to vector<1x8x16xf32>
    tpu.vector_store %arg5[%c0_191, %c0_192, %c0_193], %162 {strides = array<i32>} : memref<1x8x256xf32, #tpu.memory_space<vmem>>, vector<1x8x16xf32>,
    %163 = vector.extract_strided_slice %158 {offsets = [0, 20], sizes = [8, 16], strides = [1, 1]} : vector<8x316xf32> to vector<8x16xf32>
    %c0_194 = arith.constant 0 : index
    %c0_195 = arith.constant 0 : index
    %c16_196 = arith.constant 16 : index
    %164 = vector.load %arg5[%c0_194, %c0_195, %c16_196] : memref<1x8x256xf32, #tpu.memory_space<vmem>>, vector<1x8x16xf32>
    %165 = vector.shape_cast %164 : vector<1x8x16xf32> to vector<8x16xf32>
    %166 = vector.shape_cast %163 : vector<8x16xf32> to vector<1x8x16xf32>
    tpu.vector_store %arg5[%c0_194, %c0_195, %c16_196], %166 {strides = array<i32>} : memref<1x8x256xf32, #tpu.memory_space<vmem>>, vector<1x8x16xf32>,
    %167 = vector.extract_strided_slice %158 {offsets = [0, 40], sizes = [8, 16], strides = [1, 1]} : vector<8x316xf32> to vector<8x16xf32>
    %c0_197 = arith.constant 0 : index
    %c0_198 = arith.constant 0 : index
    %c32_199 = arith.constant 32 : index
    %168 = vector.load %arg5[%c0_197, %c0_198, %c32_199] : memref<1x8x256xf32, #tpu.memory_space<vmem>>, vector<1x8x16xf32>
    %169 = vector.shape_cast %168 : vector<1x8x16xf32> to vector<8x16xf32>
    %170 = vector.shape_cast %167 : vector<8x16xf32> to vector<1x8x16xf32>
    tpu.vector_store %arg5[%c0_197, %c0_198, %c32_199], %170 {strides = array<i32>} : memref<1x8x256xf32, #tpu.memory_space<vmem>>, vector<1x8x16xf32>,
    %171 = vector.extract_strided_slice %158 {offsets = [0, 60], sizes = [8, 16], strides = [1, 1]} : vector<8x316xf32> to vector<8x16xf32>
    %c0_200 = arith.constant 0 : index
    %c0_201 = arith.constant 0 : index
    %c48_202 = arith.constant 48 : index
    %172 = vector.load %arg5[%c0_200, %c0_201, %c48_202] : memref<1x8x256xf32, #tpu.memory_space<vmem>>, vector<1x8x16xf32>
    %173 = vector.shape_cast %172 : vector<1x8x16xf32> to vector<8x16xf32>
    %174 = vector.shape_cast %171 : vector<8x16xf32> to vector<1x8x16xf32>
    tpu.vector_store %arg5[%c0_200, %c0_201, %c48_202], %174 {strides = array<i32>} : memref<1x8x256xf32, #tpu.memory_space<vmem>>, vector<1x8x16xf32>,
    %175 = vector.extract_strided_slice %158 {offsets = [0, 80], sizes = [8, 16], strides = [1, 1]} : vector<8x316xf32> to vector<8x16xf32>
    %c0_203 = arith.constant 0 : index
    %c0_204 = arith.constant 0 : index
    %c64_205 = arith.constant 64 : index
    %176 = vector.load %arg5[%c0_203, %c0_204, %c64_205] : memref<1x8x256xf32, #tpu.memory_space<vmem>>, vector<1x8x16xf32>
    %177 = vector.shape_cast %176 : vector<1x8x16xf32> to vector<8x16xf32>
    %178 = vector.shape_cast %175 : vector<8x16xf32> to vector<1x8x16xf32>
    tpu.vector_store %arg5[%c0_203, %c0_204, %c64_205], %178 {strides = array<i32>} : memref<1x8x256xf32, #tpu.memory_space<vmem>>, vector<1x8x16xf32>,
    %179 = vector.extract_strided_slice %158 {offsets = [0, 100], sizes = [8, 16], strides = [1, 1]} : vector<8x316xf32> to vector<8x16xf32>
    %c0_206 = arith.constant 0 : index
    %c0_207 = arith.constant 0 : index
    %c80_208 = arith.constant 80 : index
    %180 = vector.load %arg5[%c0_206, %c0_207, %c80_208] : memref<1x8x256xf32, #tpu.memory_space<vmem>>, vector<1x8x16xf32>
    %181 = vector.shape_cast %180 : vector<1x8x16xf32> to vector<8x16xf32>
    %182 = vector.shape_cast %179 : vector<8x16xf32> to vector<1x8x16xf32>
    tpu.vector_store %arg5[%c0_206, %c0_207, %c80_208], %182 {strides = array<i32>} : memref<1x8x256xf32, #tpu.memory_space<vmem>>, vector<1x8x16xf32>,
    %183 = vector.extract_strided_slice %158 {offsets = [0, 120], sizes = [8, 16], strides = [1, 1]} : vector<8x316xf32> to vector<8x16xf32>
    %c0_209 = arith.constant 0 : index
    %c0_210 = arith.constant 0 : index
    %c96_211 = arith.constant 96 : index
    %184 = vector.load %arg5[%c0_209, %c0_210, %c96_211] : memref<1x8x256xf32, #tpu.memory_space<vmem>>, vector<1x8x16xf32>
    %185 = vector.shape_cast %184 : vector<1x8x16xf32> to vector<8x16xf32>
    %186 = vector.shape_cast %183 : vector<8x16xf32> to vector<1x8x16xf32>
    tpu.vector_store %arg5[%c0_209, %c0_210, %c96_211], %186 {strides = array<i32>} : memref<1x8x256xf32, #tpu.memory_space<vmem>>, vector<1x8x16xf32>,
    %187 = vector.extract_strided_slice %158 {offsets = [0, 140], sizes = [8, 16], strides = [1, 1]} : vector<8x316xf32> to vector<8x16xf32>
    %c0_212 = arith.constant 0 : index
    %c0_213 = arith.constant 0 : index
    %c112_214 = arith.constant 112 : index
    %188 = vector.load %arg5[%c0_212, %c0_213, %c112_214] : memref<1x8x256xf32, #tpu.memory_space<vmem>>, vector<1x8x16xf32>
    %189 = vector.shape_cast %188 : vector<1x8x16xf32> to vector<8x16xf32>
    %190 = vector.shape_cast %187 : vector<8x16xf32> to vector<1x8x16xf32>
    tpu.vector_store %arg5[%c0_212, %c0_213, %c112_214], %190 {strides = array<i32>} : memref<1x8x256xf32, #tpu.memory_space<vmem>>, vector<1x8x16xf32>,
    %191 = vector.extract_strided_slice %158 {offsets = [0, 160], sizes = [8, 16], strides = [1, 1]} : vector<8x316xf32> to vector<8x16xf32>
    %c0_215 = arith.constant 0 : index
    %c0_216 = arith.constant 0 : index
    %c128_217 = arith.constant 128 : index
    %192 = vector.load %arg5[%c0_215, %c0_216, %c128_217] : memref<1x8x256xf32, #tpu.memory_space<vmem>>, vector<1x8x16xf32>
    %193 = vector.shape_cast %192 : vector<1x8x16xf32> to vector<8x16xf32>
    %194 = vector.shape_cast %191 : vector<8x16xf32> to vector<1x8x16xf32>
    tpu.vector_store %arg5[%c0_215, %c0_216, %c128_217], %194 {strides = array<i32>} : memref<1x8x256xf32, #tpu.memory_space<vmem>>, vector<1x8x16xf32>,
    %195 = vector.extract_strided_slice %158 {offsets = [0, 180], sizes = [8, 16], strides = [1, 1]} : vector<8x316xf32> to vector<8x16xf32>
    %c0_218 = arith.constant 0 : index
    %c0_219 = arith.constant 0 : index
    %c144_220 = arith.constant 144 : index
    %196 = vector.load %arg5[%c0_218, %c0_219, %c144_220] : memref<1x8x256xf32, #tpu.memory_space<vmem>>, vector<1x8x16xf32>
    %197 = vector.shape_cast %196 : vector<1x8x16xf32> to vector<8x16xf32>
    %198 = vector.shape_cast %195 : vector<8x16xf32> to vector<1x8x16xf32>
    tpu.vector_store %arg5[%c0_218, %c0_219, %c144_220], %198 {strides = array<i32>} : memref<1x8x256xf32, #tpu.memory_space<vmem>>, vector<1x8x16xf32>,
    %199 = vector.extract_strided_slice %158 {offsets = [0, 200], sizes = [8, 16], strides = [1, 1]} : vector<8x316xf32> to vector<8x16xf32>
    %c0_221 = arith.constant 0 : index
    %c0_222 = arith.constant 0 : index
    %c160_223 = arith.constant 160 : index
    %200 = vector.load %arg5[%c0_221, %c0_222, %c160_223] : memref<1x8x256xf32, #tpu.memory_space<vmem>>, vector<1x8x16xf32>
    %201 = vector.shape_cast %200 : vector<1x8x16xf32> to vector<8x16xf32>
    %202 = vector.shape_cast %199 : vector<8x16xf32> to vector<1x8x16xf32>
    tpu.vector_store %arg5[%c0_221, %c0_222, %c160_223], %202 {strides = array<i32>} : memref<1x8x256xf32, #tpu.memory_space<vmem>>, vector<1x8x16xf32>,
    %203 = vector.extract_strided_slice %158 {offsets = [0, 220], sizes = [8, 16], strides = [1, 1]} : vector<8x316xf32> to vector<8x16xf32>
    %c0_224 = arith.constant 0 : index
    %c0_225 = arith.constant 0 : index
    %c176_226 = arith.constant 176 : index
    %204 = vector.load %arg5[%c0_224, %c0_225, %c176_226] : memref<1x8x256xf32, #tpu.memory_space<vmem>>, vector<1x8x16xf32>
    %205 = vector.shape_cast %204 : vector<1x8x16xf32> to vector<8x16xf32>
    %206 = vector.shape_cast %203 : vector<8x16xf32> to vector<1x8x16xf32>
    tpu.vector_store %arg5[%c0_224, %c0_225, %c176_226], %206 {strides = array<i32>} : memref<1x8x256xf32, #tpu.memory_space<vmem>>, vector<1x8x16xf32>,
    %207 = vector.extract_strided_slice %158 {offsets = [0, 240], sizes = [8, 16], strides = [1, 1]} : vector<8x316xf32> to vector<8x16xf32>
    %c0_227 = arith.constant 0 : index
    %c0_228 = arith.constant 0 : index
    %c192_229 = arith.constant 192 : index
    %208 = vector.load %arg5[%c0_227, %c0_228, %c192_229] : memref<1x8x256xf32, #tpu.memory_space<vmem>>, vector<1x8x16xf32>
    %209 = vector.shape_cast %208 : vector<1x8x16xf32> to vector<8x16xf32>
    %210 = vector.shape_cast %207 : vector<8x16xf32> to vector<1x8x16xf32>
    tpu.vector_store %arg5[%c0_227, %c0_228, %c192_229], %210 {strides = array<i32>} : memref<1x8x256xf32, #tpu.memory_space<vmem>>, vector<1x8x16xf32>,
    %211 = vector.extract_strided_slice %158 {offsets = [0, 260], sizes = [8, 16], strides = [1, 1]} : vector<8x316xf32> to vector<8x16xf32>
    %c0_230 = arith.constant 0 : index
    %c0_231 = arith.constant 0 : index
    %c208_232 = arith.constant 208 : index
    %212 = vector.load %arg5[%c0_230, %c0_231, %c208_232] : memref<1x8x256xf32, #tpu.memory_space<vmem>>, vector<1x8x16xf32>
    %213 = vector.shape_cast %212 : vector<1x8x16xf32> to vector<8x16xf32>
    %214 = vector.shape_cast %211 : vector<8x16xf32> to vector<1x8x16xf32>
    tpu.vector_store %arg5[%c0_230, %c0_231, %c208_232], %214 {strides = array<i32>} : memref<1x8x256xf32, #tpu.memory_space<vmem>>, vector<1x8x16xf32>,
    %215 = vector.extract_strided_slice %158 {offsets = [0, 280], sizes = [8, 16], strides = [1, 1]} : vector<8x316xf32> to vector<8x16xf32>
    %c0_233 = arith.constant 0 : index
    %c0_234 = arith.constant 0 : index
    %c224_235 = arith.constant 224 : index
    %216 = vector.load %arg5[%c0_233, %c0_234, %c224_235] : memref<1x8x256xf32, #tpu.memory_space<vmem>>, vector<1x8x16xf32>
    %217 = vector.shape_cast %216 : vector<1x8x16xf32> to vector<8x16xf32>
    %218 = vector.shape_cast %215 : vector<8x16xf32> to vector<1x8x16xf32>
    tpu.vector_store %arg5[%c0_233, %c0_234, %c224_235], %218 {strides = array<i32>} : memref<1x8x256xf32, #tpu.memory_space<vmem>>, vector<1x8x16xf32>,
    %219 = vector.extract_strided_slice %158 {offsets = [0, 300], sizes = [8, 16], strides = [1, 1]} : vector<8x316xf32> to vector<8x16xf32>
    %c0_236 = arith.constant 0 : index
    %c0_237 = arith.constant 0 : index
    %c240_238 = arith.constant 240 : index
    %220 = vector.load %arg5[%c0_236, %c0_237, %c240_238] : memref<1x8x256xf32, #tpu.memory_space<vmem>>, vector<1x8x16xf32>
    %221 = vector.shape_cast %220 : vector<1x8x16xf32> to vector<8x16xf32>
    %222 = vector.shape_cast %219 : vector<8x16xf32> to vector<1x8x16xf32>
    tpu.vector_store %arg5[%c0_236, %c0_237, %c240_238], %222 {strides = array<i32>} : memref<1x8x256xf32, #tpu.memory_space<vmem>>, vector<1x8x16xf32>,
    return
  }
  func.func @transform_0(%arg0: i32) -> (i32, i32, i32) {
    %c0_i32 = arith.constant 0 : i32
    %c0_i32_0 = arith.constant 0 : i32
    %c0_i32_1 = arith.constant 0 : i32
    return %arg0, %c0_i32, %c0_i32_0 : i32, i32, i32
  }
  func.func @transform_1(%arg0: i32) -> (i32, i32) {
    %c0_i32 = arith.constant 0 : i32
    %c0_i32_0 = arith.constant 0 : i32
    %c0_i32_1 = arith.constant 0 : i32
    return %c0_i32, %c0_i32_0 : i32, i32
  }
  func.func @transform_2(%arg0: i32) -> (i32, i32) {
    %c0_i32 = arith.constant 0 : i32
    %c0_i32_0 = arith.constant 0 : i32
    %c0_i32_1 = arith.constant 0 : i32
    return %c0_i32, %c0_i32_0 : i32, i32
  }
  func.func @transform_3(%arg0: i32) -> (i32, i32) {
    %c0_i32 = arith.constant 0 : i32
    %c0_i32_0 = arith.constant 0 : i32
    %c0_i32_1 = arith.constant 0 : i32
    return %c0_i32, %c0_i32_0 : i32, i32
  }
  func.func @transform_4(%arg0: i32) -> (i32, i32, i32) {
    %c0_i32 = arith.constant 0 : i32
    %c0_i32_0 = arith.constant 0 : i32
    %c0_i32_1 = arith.constant 0 : i32
    return %arg0, %c0_i32, %c0_i32_0 : i32, i32, i32
  }
}

</mosaic_0001>

<llo_original>
// kernel: tpu_custom_call.1
$region0: #{tpu_custom_call.1}
  #allocation0 [shape = 'u32[]', space=smem, size = 0x4, offset = 0x4, fixed_abs, tag = 'smem constant byte address 0x4 - core index']
  #allocation1 [shape = 'u32[144,128]{1,0:T(1,128)}', space=vmem, size = 0x12000, scoped, tag = 'internal scratch']
  #allocation2 [shape = 'bf16[4,400]{1,0:T(4,128)(2,1)}', space=vmem, size = 0x1000, scoped, tag = 'scratch operand']
  #allocation3 [shape = 'bf16[20,316]{1,0:T(8,128)(2,1)}', space=vmem, size = 0x4800, scoped, tag = 'scratch operand']
  %s0 = inlined_call_operand.vmem [shape: bf16[2,4,256], index: 0, kind: input, shape index: {}]
  %s1 = inlined_call_operand.vmem [shape: bf16[8,100], index: 1, kind: input, shape index: {}]
  %s2 = inlined_call_operand.vmem [shape: f32[8,1], index: 2, kind: input, shape index: {}]
  %s3 = inlined_call_operand.vmem [shape: f32[8,1], index: 3, kind: input, shape index: {}]
  %s4 = inlined_call_operand.hbm [shape: f32[2,8,256], index: 4, kind: output, shape index: {}]
  %s5 = sld [smem:[#allocation0]]
  $region49: #{tpu_custom_call.1} parent=0
    _
  %s7 = ssub.s32 1, %s5
  %s8 = scalar_select 0, %s7, %s5
  $region1: #{tpu_custom_call.1} parent=0
    #allocation4 [shape = 'u8[16384]{0}', space=vmem, size = 0x4000, scoped, tag = 'output window, operand 0']
    #allocation5 [shape = 's32[2]{0}', space=sflag, size = 0x8, scoped, tag = 'scoped memory for tpu_custom_call.1']
    %9 = vsyncpa [#allocation5], 0
    %s10 = scalar_lea.sflag [#allocation5], 1
    %11 = vsyncpa %s10, 0
    loop: start=0, step=1, limit=4
    $region2: #{tpu_custom_call.1} parent=1 // loop_pre_header
      _
    $region3: #{tpu_custom_call.1} parent=1 // loop_header
      %s13 = sphi 0, %s17
      %p14 = scmp.ge.s32.totalorder %s13, 4
      %s23 = sphi 0, %s25
      %s26 = sphi 0, %s23
      %s27 = sphi 0, %s26
      %s43 = sphi 0, %s27
      %s47 = sphi 0, %s47
      %s49 = sphi 0, %s47
      %s50 = sphi 0, %s49
      %s64 = sphi 0, %s50
      %s68 = sphi 0, %s68
      %s70 = sphi 0, %s68
      %s71 = sphi 0, %s70
      %s85 = sphi 0, %s71
      %s89 = sphi 0, %s89
      %s91 = sphi 0, %s89
      %s92 = sphi 0, %s91
      %s106 = sphi 0, %s92
      %s112 = sphi 0, %s114
      %s115 = sphi 0, %s112
      %s116 = sphi 0, %s115
      %s132 = sphi 0, %s116
    $region4: #{tpu_custom_call.1} parent=1 // loop_header_branch
      %16 = sbr.rel (%p14) target = $region8
    $region5: #{tpu_custom_call.1} parent=1 // loop_body
      %s18 = ssub.s32 %s13, 1
      %s19 = ssub.s32 %s13, 2
      %s20 = sadd.s32 %s13, 1
      %s21 = ssub.s32 %s13, %s20
      %p22 = scmp.eq.s32.totalorder %s21, 0
      %s24 = sadd.s32 %s23, 1
      %s25 = scalar_select %p22, %s23, %s24
      %p28 = pneg %p22
      %p29 = scmp.eq.s32.totalorder %s13, 1
      %p30 = por %p28, %p29
      %p31 = scmp.ne.s32.totalorder %s23, %s26
      %p32 = scmp.eq.s32.totalorder %s13, 0
      %p33 = por %p31, %p32
      %p34 = scmp.ne.s32.totalorder %s23, %s26
      %p35 = scmp.eq.s32.totalorder %s18, 1
      %p36 = por %p34, %p35
      %p37 = scmp.ne.s32.totalorder %s26, %s27
      %p38 = scmp.eq.s32.totalorder %s18, 0
      %p39 = por %p37, %p38
      %p40 = scmp.ne.s32.totalorder %s26, %s27
      %p41 = scmp.eq.s32.totalorder %s19, 1
      %p42 = por %p40, %p41
      %p44 = scmp.ne.s32.totalorder %s27, %s43
      %p45 = scmp.eq.s32.totalorder %s19, 0
      %p46 = por %p44, %p45
      %s48 = sadd.s32 %s47, 1
      %p51 = scmp.eq.s32.totalorder %s13, 1
      %p52 = scmp.ne.s32.totalorder %s47, %s49
      %p53 = scmp.eq.s32.totalorder %s13, 0
      %p54 = por %p52, %p53
      %p55 = scmp.ne.s32.totalorder %s47, %s49
      %p56 = scmp.eq.s32.totalorder %s18, 1
      %p57 = por %p55, %p56
      %p58 = scmp.ne.s32.totalorder %s49, %s50
      %p59 = scmp.eq.s32.totalorder %s18, 0
      %p60 = por %p58, %p59
      %p61 = scmp.ne.s32.totalorder %s49, %s50
      %p62 = scmp.eq.s32.totalorder %s19, 1
      %p63 = por %p61, %p62
      %p65 = scmp.ne.s32.totalorder %s50, %s64
      %p66 = scmp.eq.s32.totalorder %s19, 0
      %p67 = por %p65, %p66
      %s69 = sadd.s32 %s68, 1
      %p72 = scmp.eq.s32.totalorder %s13, 1
      %p73 = scmp.ne.s32.totalorder %s68, %s70
      %p74 = scmp.eq.s32.totalorder %s13, 0
      %p75 = por %p73, %p74
      %p76 = scmp.ne.s32.totalorder %s68, %s70
      %p77 = scmp.eq.s32.totalorder %s18, 1
      %p78 = por %p76, %p77
      %p79 = scmp.ne.s32.totalorder %s70, %s71
      %p80 = scmp.eq.s32.totalorder %s18, 0
      %p81 = por %p79, %p80
      %p82 = scmp.ne.s32.totalorder %s70, %s71
      %p83 = scmp.eq.s32.totalorder %s19, 1
      %p84 = por %p82, %p83
      %p86 = scmp.ne.s32.totalorder %s71, %s85
      %p87 = scmp.eq.s32.totalorder %s19, 0
      %p88 = por %p86, %p87
      %s90 = sadd.s32 %s89, 1
      %p93 = scmp.eq.s32.totalorder %s13, 1
      %p94 = scmp.ne.s32.totalorder %s89, %s91
      %p95 = scmp.eq.s32.totalorder %s13, 0
      %p96 = por %p94, %p95
      %p97 = scmp.ne.s32.totalorder %s89, %s91
      %p98 = scmp.eq.s32.totalorder %s18, 1
      %p99 = por %p97, %p98
      %p100 = scmp.ne.s32.totalorder %s91, %s92
      %p101 = scmp.eq.s32.totalorder %s18, 0
      %p102 = por %p100, %p101
      %p103 = scmp.ne.s32.totalorder %s91, %s92
      %p104 = scmp.eq.s32.totalorder %s19, 1
      %p105 = por %p103, %p104
      %p107 = scmp.ne.s32.totalorder %s92, %s106
      %p108 = scmp.eq.s32.totalorder %s19, 0
      %p109 = por %p107, %p108
      %s110 = ssub.s32 %s13, %s20
      %p111 = scmp.eq.s32.totalorder %s110, 0
      %s113 = sadd.s32 %s112, 1
      %s114 = scalar_select %p111, %s112, %s113
      %p117 = pneg %p111
      %p118 = scmp.eq.s32.totalorder %s13, 1
      %p119 = por %p117, %p118
      %p120 = scmp.ne.s32.totalorder %s112, %s115
      %p121 = scmp.eq.s32.totalorder %s13, 0
      %p122 = por %p120, %p121
      %p123 = scmp.ne.s32.totalorder %s112, %s115
      %p124 = scmp.eq.s32.totalorder %s18, 1
      %p125 = por %p123, %p124
      %p126 = scmp.ne.s32.totalorder %s115, %s116
      %p127 = scmp.eq.s32.totalorder %s18, 0
      %p128 = por %p126, %p127
      %p129 = scmp.ne.s32.totalorder %s115, %s116
      %p130 = scmp.eq.s32.totalorder %s19, 1
      %p131 = por %p129, %p130
      %p133 = scmp.ne.s32.totalorder %s116, %s132
      %p134 = scmp.eq.s32.totalorder %s19, 0
      %p135 = por %p133, %p134
      %p136 = scmp.le.s32.totalorder 1, %s13
      %p137 = scmp.lt.s32.totalorder %s13, 3
      %p138 = pnand %p136, %p137
      %p139 = pneg %p138
      // Predicated region
      $region9: #{tpu_custom_call.1} parent=5 // pred_check
        _
      $region10: #{tpu_custom_call.1} parent=5 // pred_check_branch
        %141 = sbr.rel (%p138) target = $region12
      $region11: #{tpu_custom_call.1} parent=5 // pred_region
        %s142 = ssub.s32 %s13, 1
        // Predicated region
        $region13: #{tpu_custom_call.1} parent=11 // pred_check
          %p143 = pneg %p60
        $region14: #{tpu_custom_call.1} parent=11 // pred_check_branch
          %145 = sbr.rel (%p143) target = $region16
        $region15: #{tpu_custom_call.1} parent=11 // pred_region
          _
        $region16: #{tpu_custom_call.1} parent=11 // pred_fallthru
          _
        // Predicated region
        $region17: #{tpu_custom_call.1} parent=11 // pred_check
          %p146 = pneg %p81
        $region18: #{tpu_custom_call.1} parent=11 // pred_check_branch
          %148 = sbr.rel (%p146) target = $region20
        $region19: #{tpu_custom_call.1} parent=11 // pred_region
          _
        $region20: #{tpu_custom_call.1} parent=11 // pred_fallthru
          _
        // Predicated region
        $region21: #{tpu_custom_call.1} parent=11 // pred_check
          %p149 = pneg %p102
        $region22: #{tpu_custom_call.1} parent=11 // pred_check_branch
          %151 = sbr.rel (%p149) target = $region24
        $region23: #{tpu_custom_call.1} parent=11 // pred_region
          _
        $region24: #{tpu_custom_call.1} parent=11 // pred_fallthru
          _
      $region12: #{tpu_custom_call.1} parent=5 // pred_fallthru
        _
      %p152 = scmp.lt.s32.totalorder %s13, 2
      // Predicated region
      $region25: #{tpu_custom_call.1} parent=5 // pred_check
        %p153 = pneg %p152
      $region26: #{tpu_custom_call.1} parent=5 // pred_check_branch
        %155 = sbr.rel (%p153) target = $region28
      $region27: #{tpu_custom_call.1} parent=5 // pred_region
        // Predicated region
        $region29: #{tpu_custom_call.1} parent=27 // pred_check
          %p156 = pneg %p33
        $region30: #{tpu_custom_call.1} parent=27 // pred_check_branch
          %158 = sbr.rel (%p156) target = $region32
        $region31: #{tpu_custom_call.1} parent=27 // pred_region
          %p159 = scmp.lt.s32.totalorder %s13, 1
          %s160 = scalar_select %p159, %s13, 1
          %s161 = smul.addr %s160, 2
          %s162 = smul.addr %s161, 2
          %s163 = scalar_lea.vmem %s0, %s162
        $region32: #{tpu_custom_call.1} parent=27 // pred_fallthru
          _
      $region28: #{tpu_custom_call.1} parent=5 // pred_fallthru
        _
      %p164 = scmp.le.s32.totalorder 1, %s13
      %p165 = scmp.lt.s32.totalorder %s13, 3
      %p166 = pnand %p164, %p165
      %p167 = pneg %p166
      // Predicated region
      $region33: #{tpu_custom_call.1} parent=5 // pred_check
        _
      $region34: #{tpu_custom_call.1} parent=5 // pred_check_branch
        %169 = sbr.rel (%p166) target = $region36
      $region35: #{tpu_custom_call.1} parent=5 // pred_region
        %s170 = ssub.s32 %s13, 1
        %p171 = scmp.lt.s32.totalorder %s18, 1
        %s172 = scalar_select %p171, %s18, 1
        %s173 = smul.addr %s172, 2
        %s174 = smul.addr %s173, 2
        %s175 = scalar_lea.vmem %s0, %s174
        %p176 = pneg %p39
        %p177 = pneg %p36
        %p178 = pneg %p60
        %p179 = pneg %p57
        %p180 = pneg %p81
        %p181 = pneg %p78
        %p182 = pneg %p102
        %p183 = pneg %p99
        %p184 = pneg %p128
        %p185 = pneg %p125
        %s186 = sand.u32 %s115, 1
        %s187 = scalar_lea.sflag [#allocation5], %s186
        %s188 = sand.u32 %s115, 1
        %s189 = smul.addr %s188, 16
        %s190 = scalar_lea.vmem [#allocation4], %s189
        %p191 = scmp.lt.s32.totalorder %s18, 1
        %s192 = scalar_select %p191, %s18, 1
        %s193 = smul.addr %s192, 2
        %s194 = smul.addr %s193, 2
        %s195 = scalar_lea.vmem %s0, %s194
        %vm197 = vcmask 336896
        %198 = vst.msk [vmem:[#allocation2] sm:$0x3] %vm197, 0
        %vm199 = vcmask 501200
        %200 = vst.msk [vmem:[#allocation2] sm:$0x3] %vm199, 0
        %vm201 = vcmask 665200
        %202 = vst.msk [vmem:[#allocation2] sm:$0x3] %vm201, 0
        %vm203 = vcmask 829200
        %204 = vst.msk [vmem:[#allocation2] sm:$0x3] %vm203, 0
        %vm205 = vcmask 993200
        %206 = vst.msk [vmem:[#allocation2] sm:$0x3] %vm205, 0
        %vm207 = vcmask 107600
        %208 = vst.msk [vmem:[#allocation2 + $0x2] sm:$0x3] %vm207, 0
        %vm209 = vcmask 271600
        %210 = vst.msk [vmem:[#allocation2 + $0x2] sm:$0x3] %vm209, 0
        %vm211 = vcmask 435600
        %212 = vst.msk [vmem:[#allocation2 + $0x2] sm:$0x3] %vm211, 0
        %vm213 = vcmask 599600
        %214 = vst.msk [vmem:[#allocation2 + $0x2] sm:$0x3] %vm213, 0
        %vm215 = vcmask 763600
        %216 = vst.msk [vmem:[#allocation2 + $0x2] sm:$0x3] %vm215, 0
        %vm217 = vcmask 927600
        %218 = vst.msk [vmem:[#allocation2 + $0x2] sm:$0x3] %vm217, 0
        %vm219 = vcmask 42000
        %220 = vst.msk [vmem:[#allocation2 + $0x4] sm:$0x3] %vm219, 0
        %vm221 = vcmask 206000
        %222 = vst.msk [vmem:[#allocation2 + $0x4] sm:$0x3] %vm221, 0
        %vm223 = vcmask 370000
        %224 = vst.msk [vmem:[#allocation2 + $0x4] sm:$0x3] %vm223, 0
        %vm225 = vcmask 534000
        %226 = vst.msk [vmem:[#allocation2 + $0x4] sm:$0x3] %vm225, 0
        %vm227 = vcmask 698000
        %228 = vst.msk [vmem:[#allocation2 + $0x4] sm:$0x3] %vm227, 0
        %vm229 = vcmask 1042224
        %vm230 = vcmask 125954
        %vm231 = vmor %vm230, %vm229
        %232 = vst.msk [vmem:[#allocation2 + $0x4] sm:$0xf] %vm231, 0
        %v233 = vld [vmem:[%s195] sm:$0x3]
        %235 = vrot.lane.b32.xlu0 %v233, 42
        %v236 = vpop.permute.xlu0 %235
        %vm238 = vcmask 468304
        %239 = vst.msk [vmem:[#allocation2] sm:$0x3] %vm238, %v236
        %v240 = vld [vmem:[%s195] sm:$0x3]
        %242 = vrot.lane.b32.xlu0 %v240, 46
        %v243 = vpop.permute.xlu0 %242
        %vm245 = vcmask 632304
        %246 = vst.msk [vmem:[#allocation2] sm:$0x3] %vm245, %v243
        %v247 = vld [vmem:[%s195] sm:$0x3]
        %249 = vrot.lane.b32.xlu0 %v247, 50
        %v250 = vpop.permute.xlu0 %249
        %vm252 = vcmask 796304
        %253 = vst.msk [vmem:[#allocation2] sm:$0x3] %vm252, %v250
        %v254 = vld [vmem:[%s195] sm:$0x3]
        %256 = vrot.lane.b32.xlu0 %v254, 54
        %v257 = vpop.permute.xlu0 %256
        %vm259 = vcmask 960304
        %260 = vst.msk [vmem:[#allocation2] sm:$0x3] %vm259, %v257
        %v261 = vld [vmem:[%s195] sm:$0x3]
        %263 = vrot.lane.b32.xlu0 %v261, 58
        %v264 = vpop.permute.xlu0 %263
        %v265 = vrot.slane %v264, 6
        %vm266 = vcmask 474112
        %v267 = vsel %vm266, %v265, %v264
        %vm269 = vcmask 1042384
        %vm270 = vcmask 76802
        %vm271 = vmor %vm270, %vm269
        %272 = vst.msk [vmem:[#allocation2] sm:$0xf] %vm271, %v267
        %v273 = vld [vmem:[%s195] sm:$0x3]
        %275 = vrot.lane.b32.xlu0 %v273, 62
        %v276 = vpop.permute.xlu0 %275
        %vm278 = vcmask 238704
        %279 = vst.msk [vmem:[#allocation2 + $0x2] sm:$0x3] %vm278, %v276
        %v280 = vld [vmem:[%s195] sm:$0x3]
        %282 = vrot.lane.b32.xlu0 %v280, 66
        %v283 = vpop.permute.xlu0 %282
        %vm285 = vcmask 402704
        %286 = vst.msk [vmem:[#allocation2 + $0x2] sm:$0x3] %vm285, %v283
        %v287 = vld [vmem:[%s195] sm:$0x3]
        %289 = vrot.lane.b32.xlu0 %v287, 70
        %v290 = vpop.permute.xlu0 %289
        %vm292 = vcmask 566704
        %293 = vst.msk [vmem:[#allocation2 + $0x2] sm:$0x3] %vm292, %v290
        %v294 = vld [vmem:[%s195 + $0x2] sm:$0x3]
        %296 = vrot.lane.b32.xlu0 %v294, 74
        %v297 = vpop.permute.xlu0 %296
        %vm299 = vcmask 730704
        %300 = vst.msk [vmem:[#allocation2 + $0x2] sm:$0x3] %vm299, %v297
        %v301 = vld [vmem:[%s195 + $0x2] sm:$0x3]
        %303 = vrot.lane.b32.xlu0 %v301, 78
        %v304 = vpop.permute.xlu0 %303
        %vm306 = vcmask 894704
        %307 = vst.msk [vmem:[#allocation2 + $0x2] sm:$0x3] %vm306, %v304
        %v308 = vld [vmem:[%s195 + $0x2] sm:$0x3]
        %310 = vrot.lane.b32.xlu0 %v308, 82
        %v311 = vpop.permute.xlu0 %310
        %v312 = vrot.slane %v311, 6
        %vm313 = vcmask 670720
        %v314 = vsel %vm313, %v312, %v311
        %vm316 = vcmask 1042320
        %vm317 = vcmask 11266
        %vm318 = vmor %vm317, %vm316
        %319 = vst.msk [vmem:[#allocation2 + $0x2] sm:$0xf] %vm318, %v314
        %v320 = vld [vmem:[%s195 + $0x2] sm:$0x3]
        %322 = vrot.lane.b32.xlu0 %v320, 86
        %v323 = vpop.permute.xlu0 %322
        %vm325 = vcmask 173104
        %326 = vst.msk [vmem:[#allocation2 + $0x4] sm:$0x3] %vm325, %v323
        %v327 = vld [vmem:[%s195 + $0x2] sm:$0x3]
        %329 = vrot.lane.b32.xlu0 %v327, 90
        %v330 = vpop.permute.xlu0 %329
        %vm332 = vcmask 337104
        %333 = vst.msk [vmem:[#allocation2 + $0x4] sm:$0x3] %vm332, %v330
        %v334 = vld [vmem:[%s195 + $0x2] sm:$0x3]
        %336 = vrot.lane.b32.xlu0 %v334, 94
        %v337 = vpop.permute.xlu0 %336
        %vm339 = vcmask 501104
        %340 = vst.msk [vmem:[#allocation2 + $0x4] sm:$0x3] %vm339, %v337
        %v341 = vld [vmem:[%s195 + $0x2] sm:$0x3]
        %343 = vrot.lane.b32.xlu0 %v341, 98
        %v344 = vpop.permute.xlu0 %343
        %vm346 = vcmask 665104
        %347 = vst.msk [vmem:[#allocation2 + $0x4] sm:$0x3] %vm346, %v344
        %v348 = vld [vmem:[%s195 + $0x2] sm:$0x3]
        %350 = vrot.lane.b32.xlu0 %v348, 102
        %v351 = vpop.permute.xlu0 %350
        %vm353 = vcmask 829104
        %354 = vst.msk [vmem:[#allocation2 + $0x4] sm:$0x3] %vm353, %v351
        %v355 = vld [vmem:[#allocation2] sm:$0x3f]
        %v357 = vcombine.high %v355, %v355
        %v359 = vunpack.c.l.s4 1983009808
        %v360 = vunpack.c.0.s8 %v359
        %v361 = vlaneseq
        %v362 = vshrl.u32 %v361, 7
        %v363 = vsub.s32 %v360, %v362
        %v364 = vrot.slane %v355, %v363
        %v366 = vunpack.c.l.s4 1983009808
        %v367 = vunpack.c.0.s8 %v366
        %v368 = vlaneseq
        %v369 = vshrl.u32 %v368, 7
        %v370 = vsub.s32 %v367, %v369
        %v371 = vrot.slane %v357, %v370
        %374 = vst [vmem:[#allocation3] sm:$0x33] %v364
        %vm375 = vcmask 484352
        %376 = vst.msk [vmem:[#allocation3 + $0x8] sm:$0x3] %vm375, %v371
        %v377 = vld [vmem:[#allocation2] sm:$0x3f]
        %v379 = vcombine.low %v377, %v377
        %v381 = vunpack.c.l.s4 1983009808
        %v382 = vunpack.c.0.s8 %v381
        %v383 = vlaneseq
        %v384 = vshrl.u32 %v383, 7
        %v385 = vsub.s32 %v382, %v384
        %v386 = vrot.slane %v379, %v385
        %v388 = vunpack.c.l.s4 1983009808
        %v389 = vunpack.c.0.s8 %v388
        %v390 = vlaneseq
        %v391 = vshrl.u32 %v390, 7
        %v392 = vsub.s32 %v389, %v391
        %v393 = vrot.slane %v377, %v392
        %394 = vrot.lane.b32.xlu0 %v386, 127
        %v395 = vpop.permute.xlu0 %394
        %396 = vrot.lane.b32.xlu0 %v393, 127
        %v397 = vpop.permute.xlu0 %396
        %v398 = vrot.slane %v395, 4
        %v399 = vrot.slane %v397, 4
        %vm400 = vcmask 1043456
        %v401 = vsel %vm400, %v398, %v399
        %vm402 = vcmask 1039360
        %v403 = vsel %vm402, %v395, %v401
        %406 = vst [vmem:[#allocation3] sm:$0xcc] %v403
        %vm407 = vcmask 486402
        %408 = vst.msk [vmem:[#allocation3 + $0x8] sm:$0xc] %vm407, %v397
        %v409 = vld [vmem:[#allocation2] sm:$0x3f]
        %v411 = vcombine.high %v409, %v409
        %v413 = vunpack.c.l.s4 1983009808
        %v414 = vunpack.c.0.s8 %v413
        %v415 = vlaneseq
        %v416 = vshrl.u32 %v415, 7
        %v417 = vsub.s32 %v414, %v416
        %v418 = vrot.slane %v409, %v417
        %v420 = vunpack.c.l.s4 1983009808
        %v421 = vunpack.c.0.s8 %v420
        %v422 = vlaneseq
        %v423 = vshrl.u32 %v422, 7
        %v424 = vsub.s32 %v421, %v423
        %v425 = vrot.slane %v411, %v424
        %426 = vrot.lane.b32.xlu0 %v418, 126
        %v427 = vpop.permute.xlu0 %426
        %428 = vrot.lane.b32.xlu0 %v425, 126
        %v429 = vpop.permute.xlu0 %428
        %v430 = vrot.slane %v427, 4
        %v431 = vrot.slane %v429, 4
        %v432 = vsel %vm400, %v430, %v431
        %vm433 = vcmask 1031168
        %v434 = vsel %vm433, %v427, %v432
        %437 = vst [vmem:[#allocation3 + $0xc] sm:$0x33] %v434
        %438 = vst.msk [vmem:[#allocation3 + $0x14] sm:$0x3] %vm375, %v429
        %v439 = vld [vmem:[#allocation2] sm:$0x3f]
        %v441 = vcombine.low %v439, %v439
        %v443 = vunpack.c.l.s4 1983009808
        %v444 = vunpack.c.0.s8 %v443
        %v445 = vlaneseq
        %v446 = vshrl.u32 %v445, 7
        %v447 = vsub.s32 %v444, %v446
        %v448 = vrot.slane %v441, %v447
        %v450 = vunpack.c.l.s4 1983009808
        %v451 = vunpack.c.0.s8 %v450
        %v452 = vlaneseq
        %v453 = vshrl.u32 %v452, 7
        %v454 = vsub.s32 %v451, %v453
        %v455 = vrot.slane %v439, %v454
        %456 = vrot.lane.b32.xlu0 %v448, 125
        %v457 = vpop.permute.xlu0 %456
        %458 = vrot.lane.b32.xlu0 %v455, 125
        %v459 = vpop.permute.xlu0 %458
        %v460 = vrot.slane %v457, 4
        %v461 = vrot.slane %v459, 4
        %v462 = vsel %vm400, %v460, %v461
        %vm463 = vcmask 1022976
        %v464 = vsel %vm463, %v457, %v462
        %467 = vst [vmem:[#allocation3 + $0xc] sm:$0xcc] %v464
        %468 = vst.msk [vmem:[#allocation3 + $0x14] sm:$0xc] %vm407, %v459
        %v469 = vld [vmem:[#allocation2] sm:$0x3f]
        %v471 = vcombine.high %v469, %v469
        %v473 = vunpack.c.l.s4 1983009808
        %v474 = vunpack.c.0.s8 %v473
        %v475 = vlaneseq
        %v476 = vshrl.u32 %v475, 7
        %v477 = vsub.s32 %v474, %v476
        %v478 = vrot.slane %v469, %v477
        %v480 = vunpack.c.l.s4 1983009808
        %v481 = vunpack.c.0.s8 %v480
        %v482 = vlaneseq
        %v483 = vshrl.u32 %v482, 7
        %v484 = vsub.s32 %v481, %v483
        %v485 = vrot.slane %v471, %v484
        %486 = vrot.lane.b32.xlu0 %v478, 124
        %v487 = vpop.permute.xlu0 %486
        %488 = vrot.lane.b32.xlu0 %v485, 124
        %v489 = vpop.permute.xlu0 %488
        %v490 = vrot.slane %v487, 4
        %v491 = vrot.slane %v489, 4
        %v492 = vsel %vm400, %v490, %v491
        %vm493 = vcmask 1014784
        %v494 = vsel %vm493, %v487, %v492
        %497 = vst [vmem:[#allocation3 + $0x18] sm:$0x33] %v494
        %498 = vst.msk [vmem:[#allocation3 + $0x20] sm:$0x3] %vm375, %v489
        %v499 = vld [vmem:[%s1] sm:$0xf]
        %v500 = vld [vmem:[#allocation3] sm:$0xff]
        %v501 = vld [vmem:[#allocation3 + $0x8] sm:$0xf]
        %v502 = vld [vmem:[#allocation3 + $0xc] sm:$0xff]
        %v503 = vld [vmem:[#allocation3 + $0x14] sm:$0xf]
        %v504 = vld [vmem:[#allocation3 + $0x18] sm:$0x33]
        %v505 = vld [vmem:[#allocation3 + $0x20] sm:$0x3]
        %v506 = vld [vmem:[#allocation2] sm:$0x3f]
        %v508 = vcombine.high %v506, %v506
        %v510 = vunpack.c.l.s4 1983009808
        %v511 = vunpack.c.0.s8 %v510
        %v512 = vlaneseq
        %v513 = vshrl.u32 %v512, 7
        %v514 = vsub.s32 %v511, %v513
        %v515 = vrot.slane %v506, %v514
        %v517 = vunpack.c.l.s4 1983009808
        %v518 = vunpack.c.0.s8 %v517
        %v519 = vlaneseq
        %v520 = vshrl.u32 %v519, 7
        %v521 = vsub.s32 %v518, %v520
        %v522 = vrot.slane %v508, %v521
        %523 = vrot.lane.b32.xlu0 %v515, 108
        %v524 = vpop.permute.xlu0 %523
        %525 = vrot.lane.b32.xlu0 %v522, 108
        %v526 = vpop.permute.xlu0 %525
        %v527 = vrot.slane %v524, 4
        %v528 = vrot.slane %v526, 4
        %v529 = vsel %vm400, %v527, %v528
        %vm530 = vcmask 883712
        %v531 = vsel %vm530, %v524, %v529
        %534 = vst [vmem:[#allocation3] sm:$0x33] %v531
        %535 = vst.msk [vmem:[#allocation3 + $0x8] sm:$0x3] %vm375, %v526
        %v536 = vld [vmem:[#allocation2] sm:$0x3f]
        %v538 = vcombine.low %v536, %v536
        %v540 = vunpack.c.l.s4 1983009808
        %v541 = vunpack.c.0.s8 %v540
        %v542 = vlaneseq
        %v543 = vshrl.u32 %v542, 7
        %v544 = vsub.s32 %v541, %v543
        %v545 = vrot.slane %v538, %v544
        %v547 = vunpack.c.l.s4 1983009808
        %v548 = vunpack.c.0.s8 %v547
        %v549 = vlaneseq
        %v550 = vshrl.u32 %v549, 7
        %v551 = vsub.s32 %v548, %v550
        %v552 = vrot.slane %v536, %v551
        %553 = vrot.lane.b32.xlu0 %v545, 107
        %v554 = vpop.permute.xlu0 %553
        %555 = vrot.lane.b32.xlu0 %v552, 107
        %v556 = vpop.permute.xlu0 %555
        %v557 = vrot.slane %v554, 4
        %v558 = vrot.slane %v556, 4
        %v559 = vsel %vm400, %v557, %v558
        %vm560 = vcmask 875520
        %v561 = vsel %vm560, %v554, %v559
        %564 = vst [vmem:[#allocation3] sm:$0xcc] %v561
        %565 = vst.msk [vmem:[#allocation3 + $0x8] sm:$0xc] %vm407, %v556
        %v566 = vld [vmem:[#allocation2] sm:$0x3f]
        %v568 = vcombine.high %v566, %v566
        %v570 = vunpack.c.l.s4 1983009808
        %v571 = vunpack.c.0.s8 %v570
        %v572 = vlaneseq
        %v573 = vshrl.u32 %v572, 7
        %v574 = vsub.s32 %v571, %v573
        %v575 = vrot.slane %v566, %v574
        %v577 = vunpack.c.l.s4 1983009808
        %v578 = vunpack.c.0.s8 %v577
        %v579 = vlaneseq
        %v580 = vshrl.u32 %v579, 7
        %v581 = vsub.s32 %v578, %v580
        %v582 = vrot.slane %v568, %v581
        %583 = vrot.lane.b32.xlu0 %v575, 106
        %v584 = vpop.permute.xlu0 %583
        %585 = vrot.lane.b32.xlu0 %v582, 106
        %v586 = vpop.permute.xlu0 %585
        %v587 = vrot.slane %v584, 4
        %v588 = vrot.slane %v586, 4
        %v589 = vsel %vm400, %v587, %v588
        %vm590 = vcmask 867328
        %v591 = vsel %vm590, %v584, %v589
        %594 = vst [vmem:[#allocation3 + $0xc] sm:$0x33] %v591
        %595 = vst.msk [vmem:[#allocation3 + $0x14] sm:$0x3] %vm375, %v586
        %v596 = vld [vmem:[#allocation2] sm:$0x3f]
        %v598 = vcombine.low %v596, %v596
        %v600 = vunpack.c.l.s4 1983009808
        %v601 = vunpack.c.0.s8 %v600
        %v602 = vlaneseq
        %v603 = vshrl.u32 %v602, 7
        %v604 = vsub.s32 %v601, %v603
        %v605 = vrot.slane %v598, %v604
        %v607 = vunpack.c.l.s4 1983009808
        %v608 = vunpack.c.0.s8 %v607
        %v609 = vlaneseq
        %v610 = vshrl.u32 %v609, 7
        %v611 = vsub.s32 %v608, %v610
        %v612 = vrot.slane %v596, %v611
        %613 = vrot.lane.b32.xlu0 %v605, 105
        %v614 = vpop.permute.xlu0 %613
        %615 = vrot.lane.b32.xlu0 %v612, 105
        %v616 = vpop.permute.xlu0 %615
        %v617 = vrot.slane %v614, 4
        %v618 = vrot.slane %v616, 4
        %v619 = vsel %vm400, %v617, %v618
        %vm620 = vcmask 859136
        %v621 = vsel %vm620, %v614, %v619
        %624 = vst [vmem:[#allocation3 + $0xc] sm:$0xcc] %v621
        %625 = vst.msk [vmem:[#allocation3 + $0x14] sm:$0xc] %vm407, %v616
        %v626 = vld [vmem:[#allocation2] sm:$0x3f]
        %v628 = vcombine.high %v626, %v626
        %v630 = vunpack.c.l.s4 1983009808
        %v631 = vunpack.c.0.s8 %v630
        %v632 = vlaneseq
        %v633 = vshrl.u32 %v632, 7
        %v634 = vsub.s32 %v631, %v633
        %v635 = vrot.slane %v626, %v634
        %v637 = vunpack.c.l.s4 1983009808
        %v638 = vunpack.c.0.s8 %v637
        %v639 = vlaneseq
        %v640 = vshrl.u32 %v639, 7
        %v641 = vsub.s32 %v638, %v640
        %v642 = vrot.slane %v628, %v641
        %643 = vrot.lane.b32.xlu0 %v635, 104
        %v644 = vpop.permute.xlu0 %643
        %645 = vrot.lane.b32.xlu0 %v642, 104
        %v646 = vpop.permute.xlu0 %645
        %v647 = vrot.slane %v644, 4
        %v648 = vrot.slane %v646, 4
        %v649 = vsel %vm400, %v647, %v648
        %vm650 = vcmask 850944
        %v651 = vsel %vm650, %v644, %v649
        %654 = vst [vmem:[#allocation3 + $0x18] sm:$0x33] %v651
        %655 = vst.msk [vmem:[#allocation3 + $0x20] sm:$0x3] %vm375, %v646
        %v656 = vld [vmem:[%s1] sm:$0xf]
        %v657 = vld [vmem:[#allocation3] sm:$0xff]
        %v658 = vld [vmem:[#allocation3 + $0x8] sm:$0xf]
        %v659 = vld [vmem:[#allocation3 + $0xc] sm:$0xff]
        %v660 = vld [vmem:[#allocation3 + $0x14] sm:$0xf]
        %v661 = vld [vmem:[#allocation3 + $0x18] sm:$0x33]
        %v662 = vld [vmem:[#allocation3 + $0x20] sm:$0x3]
        %v664 = vunpack.c.l.b16 %v656
        %v665 = vpack.c.b16 %v664, %v664
        %666 = vrot.lane.b32.xlu0 %v665, 108
        %v667 = vpop.permute.xlu0 %666
        %v674 = vunpack.c.l.b16 %v657
        %v675 = vunpack.c.h.b16 %v657
        %v676 = vunpack.c.l.b16 %v658
        %v677 = vunpack.c.l.b16 %v659
        %v678 = vunpack.c.h.b16 %v659
        %v679 = vunpack.c.l.b16 %v660
        %v680 = vunpack.c.l.b16 %v661
        %v681 = vunpack.c.h.b16 %v661
        %v682 = vunpack.c.l.b16 %v662
        %v683 = vpack.c.b16 %v677, %v674
        %v684 = vpack.c.b16 %v678, %v675
        %v685 = vpack.c.b16 %v679, %v676
        %v686 = vpack.c.b16 %v680, %v680
        %v687 = vpack.c.b16 %v681, %v681
        %v688 = vpack.c.b16 %v682, %v682
        %vm692 = vcmask 162816
        %v694 = vsel %vm692, %v667, 0
        %vm696 = vcmask 1041408
        %v698 = vsel %vm696, %v686, 0
        %v701 = vsel %vm696, %v687, 0
        %v704 = vsel %vm696, %v688, 0
        %706 = vmatprep.subr.bf16.mxu0 %v684
        %707 = vmatpush1.bf16.msra.mxu0 %v683
        %708 = vmatprep.subr.bf16.mxu0 %v701
        %709 = vmatpush1.bf16.msra.mxu0 %v698
        %710 = vmatprep.subr.bf16.mxu0 0
        %711 = vmatpush1.bf16.msra.mxu0 0
        %712 = vmatprep.subr.bf16.mxu0 0
        %713 = vmatpush1.bf16.msra.mxu0 0
        %714 = vmatprep.subr.bf16.mxu0 0
        %715 = vmatpush1.bf16.msra.mxu0 0
        %716 = vmatprep.subr.bf16.mxu0 0
        %717 = vmatpush1.bf16.msra.mxu0 0
        %718 = vmatprep.subr.bf16.mxu0 0
        %719 = vmatpush1.bf16.msra.mxu0 0
        %720 = vmatprep.subr.bf16.mxu0 0
        %721 = vmatpush1.bf16.msra.mxu0 0
        %722 = vmatprep.subr.bf16.mxu0 0
        %723 = vmatpush1.bf16.msra.mxu0 0
        %724 = vmatprep.subr.bf16.mxu0 0
        %725 = vmatpush1.bf16.msra.mxu0 0
        %726 = vmatprep.subr.bf16.mxu0 0
        %727 = vmatpush1.bf16.msra.mxu0 0
        %728 = vmatprep.subr.bf16.mxu0 0
        %729 = vmatpush1.bf16.msra.mxu0 0
        %730 = vmatprep.subr.bf16.mxu0 0
        %731 = vmatpush1.bf16.msra.mxu0 0
        %732 = vmatprep.subr.bf16.mxu0 0
        %733 = vmatpush1.bf16.msra.mxu0 0
        %734 = vmatprep.subr.bf16.mxu0 0
        %735 = vmatpush1.bf16.msra.mxu0 0
        %736 = vmatprep.subr.bf16.mxu0 0
        %737 = vmatpush1.bf16.msra.mxu0 0
        %738 = vmatprep.mubr.bf16.mxu0 0
        %739 = vmatmul.mubr.bf16.gmra.mrb[0].mxu0 %v694
        %v740 = vpop.f32.mrb[0].mxu0
        %v741 = vadd.f32 0.0, %v740
        %v742 = vpop.f32.mrb[0].mxu0
        %v743 = vadd.f32 0.0, %v742
        %v744 = vpop.f32.mrb[0].mxu0
        %v745 = vpop.f32.mrb[0].mxu0
        %746 = vdwg.mxu0
        %747 = vmatprep.subr.bf16.mxu0 0
        %748 = vmatpush1.bf16.msra.mxu0 %v685
        %749 = vmatprep.subr.bf16.mxu0 0
        %750 = vmatpush1.bf16.msra.mxu0 %v704
        %751 = vmatprep.subr.bf16.mxu0 0
        %752 = vmatpush1.bf16.msra.mxu0 0
        %753 = vmatprep.subr.bf16.mxu0 0
        %754 = vmatpush1.bf16.msra.mxu0 0
        %755 = vmatprep.subr.bf16.mxu0 0
        %756 = vmatpush1.bf16.msra.mxu0 0
        %757 = vmatprep.subr.bf16.mxu0 0
        %758 = vmatpush1.bf16.msra.mxu0 0
        %759 = vmatprep.subr.bf16.mxu0 0
        %760 = vmatpush1.bf16.msra.mxu0 0
        %761 = vmatprep.subr.bf16.mxu0 0
        %762 = vmatpush1.bf16.msra.mxu0 0
        %763 = vmatprep.subr.bf16.mxu0 0
        %764 = vmatpush1.bf16.msra.mxu0 0
        %765 = vmatprep.subr.bf16.mxu0 0
        %766 = vmatpush1.bf16.msra.mxu0 0
        %767 = vmatprep.subr.bf16.mxu0 0
        %768 = vmatpush1.bf16.msra.mxu0 0
        %769 = vmatprep.subr.bf16.mxu0 0
        %770 = vmatpush1.bf16.msra.mxu0 0
        %771 = vmatprep.subr.bf16.mxu0 0
        %772 = vmatpush1.bf16.msra.mxu0 0
        %773 = vmatprep.subr.bf16.mxu0 0
        %774 = vmatpush1.bf16.msra.mxu0 0
        %775 = vmatprep.subr.bf16.mxu0 0
        %776 = vmatpush1.bf16.msra.mxu0 0
        %777 = vmatprep.subr.bf16.mxu0 0
        %778 = vmatpush1.bf16.msra.mxu0 0
        %779 = vmatprep.mubr.bf16.mxu0 0
        %780 = vmatmul.mubr.bf16.gmra.mrb[0].mxu0 %v694
        %v781 = vpop.f32.mrb[0].mxu0
        %v782 = vadd.f32 0.0, %v781
        %v783 = vpop.f32.mrb[0].mxu0
        %v784 = vpop.f32.mrb[0].mxu0
        %v785 = vpop.f32.mrb[0].mxu0
        %786 = vdwg.mxu0
        %v793 = vunpack.c.l.b16 %v500
        %v794 = vunpack.c.h.b16 %v500
        %v795 = vunpack.c.l.b16 %v501
        %v796 = vunpack.c.l.b16 %v502
        %v797 = vunpack.c.h.b16 %v502
        %v798 = vunpack.c.l.b16 %v503
        %v799 = vunpack.c.l.b16 %v504
        %v800 = vunpack.c.h.b16 %v504
        %v801 = vunpack.c.l.b16 %v505
        %v802 = vpack.c.b16 %v796, %v793
        %v803 = vpack.c.b16 %v797, %v794
        %v804 = vpack.c.b16 %v798, %v795
        %v805 = vpack.c.b16 %v799, %v799
        %v806 = vpack.c.b16 %v800, %v800
        %v807 = vpack.c.b16 %v801, %v801
        %v812 = vsel %vm692, %v499, 0
        %v815 = vsel %vm696, %v805, 0
        %v818 = vsel %vm696, %v806, 0
        %v821 = vsel %vm696, %v807, 0
        %823 = vmatprep.subr.bf16.mxu0 %v803
        %824 = vmatpush1.bf16.msra.mxu0 %v802
        %825 = vmatprep.subr.bf16.mxu0 %v818
        %826 = vmatpush1.bf16.msra.mxu0 %v815
        %827 = vmatprep.subr.bf16.mxu0 0
        %828 = vmatpush1.bf16.msra.mxu0 0
        %829 = vmatprep.subr.bf16.mxu0 0
        %830 = vmatpush1.bf16.msra.mxu0 0
        %831 = vmatprep.subr.bf16.mxu0 0
        %832 = vmatpush1.bf16.msra.mxu0 0
        %833 = vmatprep.subr.bf16.mxu0 0
        %834 = vmatpush1.bf16.msra.mxu0 0
        %835 = vmatprep.subr.bf16.mxu0 0
        %836 = vmatpush1.bf16.msra.mxu0 0
        %837 = vmatprep.subr.bf16.mxu0 0
        %838 = vmatpush1.bf16.msra.mxu0 0
        %839 = vmatprep.subr.bf16.mxu0 0
        %840 = vmatpush1.bf16.msra.mxu0 0
        %841 = vmatprep.subr.bf16.mxu0 0
        %842 = vmatpush1.bf16.msra.mxu0 0
        %843 = vmatprep.subr.bf16.mxu0 0
        %844 = vmatpush1.bf16.msra.mxu0 0
        %845 = vmatprep.subr.bf16.mxu0 0
        %846 = vmatpush1.bf16.msra.mxu0 0
        %847 = vmatprep.subr.bf16.mxu0 0
        %848 = vmatpush1.bf16.msra.mxu0 0
        %849 = vmatprep.subr.bf16.mxu0 0
        %850 = vmatpush1.bf16.msra.mxu0 0
        %851 = vmatprep.subr.bf16.mxu0 0
        %852 = vmatpush1.bf16.msra.mxu0 0
        %853 = vmatprep.subr.bf16.mxu0 0
        %854 = vmatpush1.bf16.msra.mxu0 0
        %855 = vmatprep.mubr.bf16.mxu0 0
        %856 = vmatmul.mubr.bf16.gmra.mrb[0].mxu0 %v812
        %v857 = vpop.f32.mrb[0].mxu0
        %v858 = vadd.f32 %v741, %v857
        %v859 = vpop.f32.mrb[0].mxu0
        %v860 = vadd.f32 %v743, %v859
        %v861 = vpop.f32.mrb[0].mxu0
        %v862 = vpop.f32.mrb[0].mxu0
        %863 = vdwg.mxu0
        %864 = vmatprep.subr.bf16.mxu0 0
        %865 = vmatpush1.bf16.msra.mxu0 %v804
        %866 = vmatprep.subr.bf16.mxu0 0
        %867 = vmatpush1.bf16.msra.mxu0 %v821
        %868 = vmatprep.subr.bf16.mxu0 0
        %869 = vmatpush1.bf16.msra.mxu0 0
        %870 = vmatprep.subr.bf16.mxu0 0
        %871 = vmatpush1.bf16.msra.mxu0 0
        %872 = vmatprep.subr.bf16.mxu0 0
        %873 = vmatpush1.bf16.msra.mxu0 0
        %874 = vmatprep.subr.bf16.mxu0 0
        %875 = vmatpush1.bf16.msra.mxu0 0
        %876 = vmatprep.subr.bf16.mxu0 0
        %877 = vmatpush1.bf16.msra.mxu0 0
        %878 = vmatprep.subr.bf16.mxu0 0
        %879 = vmatpush1.bf16.msra.mxu0 0
        %880 = vmatprep.subr.bf16.mxu0 0
        %881 = vmatpush1.bf16.msra.mxu0 0
        %882 = vmatprep.subr.bf16.mxu0 0
        %883 = vmatpush1.bf16.msra.mxu0 0
        %884 = vmatprep.subr.bf16.mxu0 0
        %885 = vmatpush1.bf16.msra.mxu0 0
        %886 = vmatprep.subr.bf16.mxu0 0
        %887 = vmatpush1.bf16.msra.mxu0 0
        %888 = vmatprep.subr.bf16.mxu0 0
        %889 = vmatpush1.bf16.msra.mxu0 0
        %890 = vmatprep.subr.bf16.mxu0 0
        %891 = vmatpush1.bf16.msra.mxu0 0
        %892 = vmatprep.subr.bf16.mxu0 0
        %893 = vmatpush1.bf16.msra.mxu0 0
        %894 = vmatprep.subr.bf16.mxu0 0
        %895 = vmatpush1.bf16.msra.mxu0 0
        %896 = vmatprep.mubr.bf16.mxu0 0
        %897 = vmatmul.mubr.bf16.gmra.mrb[0].mxu0 %v812
        %v898 = vpop.f32.mrb[0].mxu0
        %v899 = vadd.f32 %v782, %v898
        %v900 = vpop.f32.mrb[0].mxu0
        %v901 = vpop.f32.mrb[0].mxu0
        %v902 = vpop.f32.mrb[0].mxu0
        %903 = vdwg.mxu0
        %v904 = vld [vmem:[#allocation2] sm:$0x3f]
        %v906 = vcombine.high %v904, %v904
        %v908 = vunpack.c.l.s4 1983009808
        %v909 = vunpack.c.0.s8 %v908
        %v910 = vlaneseq
        %v911 = vshrl.u32 %v910, 7
        %v912 = vsub.s32 %v909, %v911
        %v913 = vrot.slane %v904, %v912
        %v915 = vunpack.c.l.s4 1983009808
        %v916 = vunpack.c.0.s8 %v915
        %v917 = vlaneseq
        %v918 = vshrl.u32 %v917, 7
        %v919 = vsub.s32 %v916, %v918
        %v920 = vrot.slane %v906, %v919
        %921 = vrot.lane.b32.xlu0 %v913, 88
        %v922 = vpop.permute.xlu0 %921
        %923 = vrot.lane.b32.xlu0 %v920, 88
        %v924 = vpop.permute.xlu0 %923
        %v925 = vrot.slane %v922, 4
        %v926 = vrot.slane %v924, 4
        %v927 = vsel %vm400, %v925, %v926
        %vm928 = vcmask 719872
        %v929 = vsel %vm928, %v922, %v927
        %932 = vst [vmem:[#allocation3] sm:$0x33] %v929
        %933 = vst.msk [vmem:[#allocation3 + $0x8] sm:$0x3] %vm375, %v924
        %v934 = vld [vmem:[#allocation2] sm:$0x3f]
        %v936 = vcombine.low %v934, %v934
        %v938 = vunpack.c.l.s4 1983009808
        %v939 = vunpack.c.0.s8 %v938
        %v940 = vlaneseq
        %v941 = vshrl.u32 %v940, 7
        %v942 = vsub.s32 %v939, %v941
        %v943 = vrot.slane %v936, %v942
        %v945 = vunpack.c.l.s4 1983009808
        %v946 = vunpack.c.0.s8 %v945
        %v947 = vlaneseq
        %v948 = vshrl.u32 %v947, 7
        %v949 = vsub.s32 %v946, %v948
        %v950 = vrot.slane %v934, %v949
        %951 = vrot.lane.b32.xlu0 %v943, 87
        %v952 = vpop.permute.xlu0 %951
        %953 = vrot.lane.b32.xlu0 %v950, 87
        %v954 = vpop.permute.xlu0 %953
        %v955 = vrot.slane %v952, 4
        %v956 = vrot.slane %v954, 4
        %v957 = vsel %vm400, %v955, %v956
        %vm958 = vcmask 711680
        %v959 = vsel %vm958, %v952, %v957
        %962 = vst [vmem:[#allocation3] sm:$0xcc] %v959
        %963 = vst.msk [vmem:[#allocation3 + $0x8] sm:$0xc] %vm407, %v954
        %v964 = vld [vmem:[#allocation2] sm:$0x3f]
        %v966 = vcombine.high %v964, %v964
        %v968 = vunpack.c.l.s4 1983009808
        %v969 = vunpack.c.0.s8 %v968
        %v970 = vlaneseq
        %v971 = vshrl.u32 %v970, 7
        %v972 = vsub.s32 %v969, %v971
        %v973 = vrot.slane %v964, %v972
        %v975 = vunpack.c.l.s4 1983009808
        %v976 = vunpack.c.0.s8 %v975
        %v977 = vlaneseq
        %v978 = vshrl.u32 %v977, 7
        %v979 = vsub.s32 %v976, %v978
        %v980 = vrot.slane %v966, %v979
        %981 = vrot.lane.b32.xlu0 %v973, 86
        %v982 = vpop.permute.xlu0 %981
        %983 = vrot.lane.b32.xlu0 %v980, 86
        %v984 = vpop.permute.xlu0 %983
        %v985 = vrot.slane %v982, 4
        %v986 = vrot.slane %v984, 4
        %v987 = vsel %vm400, %v985, %v986
        %vm988 = vcmask 703488
        %v989 = vsel %vm988, %v982, %v987
        %992 = vst [vmem:[#allocation3 + $0xc] sm:$0x33] %v989
        %993 = vst.msk [vmem:[#allocation3 + $0x14] sm:$0x3] %vm375, %v984
        %v994 = vld [vmem:[#allocation2] sm:$0x3f]
        %v996 = vcombine.low %v994, %v994
        %v998 = vunpack.c.l.s4 1983009808
        %v999 = vunpack.c.0.s8 %v998
        %v1000 = vlaneseq
        %v1001 = vshrl.u32 %v1000, 7
        %v1002 = vsub.s32 %v999, %v1001
        %v1003 = vrot.slane %v996, %v1002
        %v1005 = vunpack.c.l.s4 1983009808
        %v1006 = vunpack.c.0.s8 %v1005
        %v1007 = vlaneseq
        %v1008 = vshrl.u32 %v1007, 7
        %v1009 = vsub.s32 %v1006, %v1008
        %v1010 = vrot.slane %v994, %v1009
        %1011 = vrot.lane.b32.xlu0 %v1003, 85
        %v1012 = vpop.permute.xlu0 %1011
        %1013 = vrot.lane.b32.xlu0 %v1010, 85
        %v1014 = vpop.permute.xlu0 %1013
        %v1015 = vrot.slane %v1012, 4
        %v1016 = vrot.slane %v1014, 4
        %v1017 = vsel %vm400, %v1015, %v1016
        %vm1018 = vcmask 695296
        %v1019 = vsel %vm1018, %v1012, %v1017
        %1022 = vst [vmem:[#allocation3 + $0xc] sm:$0xcc] %v1019
        %1023 = vst.msk [vmem:[#allocation3 + $0x14] sm:$0xc] %vm407, %v1014
        %v1024 = vld [vmem:[#allocation2] sm:$0x3f]
        %v1026 = vcombine.high %v1024, %v1024
        %v1028 = vunpack.c.l.s4 1983009808
        %v1029 = vunpack.c.0.s8 %v1028
        %v1030 = vlaneseq
        %v1031 = vshrl.u32 %v1030, 7
        %v1032 = vsub.s32 %v1029, %v1031
        %v1033 = vrot.slane %v1024, %v1032
        %v1035 = vunpack.c.l.s4 1983009808
        %v1036 = vunpack.c.0.s8 %v1035
        %v1037 = vlaneseq
        %v1038 = vshrl.u32 %v1037, 7
        %v1039 = vsub.s32 %v1036, %v1038
        %v1040 = vrot.slane %v1026, %v1039
        %1041 = vrot.lane.b32.xlu0 %v1033, 84
        %v1042 = vpop.permute.xlu0 %1041
        %1043 = vrot.lane.b32.xlu0 %v1040, 84
        %v1044 = vpop.permute.xlu0 %1043
        %v1045 = vrot.slane %v1042, 4
        %v1046 = vrot.slane %v1044, 4
        %v1047 = vsel %vm400, %v1045, %v1046
        %vm1048 = vcmask 687104
        %v1049 = vsel %vm1048, %v1042, %v1047
        %1052 = vst [vmem:[#allocation3 + $0x18] sm:$0x33] %v1049
        %1053 = vst.msk [vmem:[#allocation3 + $0x20] sm:$0x3] %vm375, %v1044
        %v1054 = vld [vmem:[%s1] sm:$0xf]
        %v1055 = vld [vmem:[#allocation3] sm:$0xff]
        %v1056 = vld [vmem:[#allocation3 + $0x8] sm:$0xf]
        %v1057 = vld [vmem:[#allocation3 + $0xc] sm:$0xff]
        %v1058 = vld [vmem:[#allocation3 + $0x14] sm:$0xf]
        %v1059 = vld [vmem:[#allocation3 + $0x18] sm:$0x33]
        %v1060 = vld [vmem:[#allocation3 + $0x20] sm:$0x3]
        %v1062 = vunpack.c.l.b16 %v1054
        %v1063 = vpack.c.b16 %v1062, %v1062
        %1064 = vrot.lane.b32.xlu0 %v1063, 88
        %v1065 = vpop.permute.xlu0 %1064
        %v1072 = vunpack.c.l.b16 %v1055
        %v1073 = vunpack.c.h.b16 %v1055
        %v1074 = vunpack.c.l.b16 %v1056
        %v1075 = vunpack.c.l.b16 %v1057
        %v1076 = vunpack.c.h.b16 %v1057
        %v1077 = vunpack.c.l.b16 %v1058
        %v1078 = vunpack.c.l.b16 %v1059
        %v1079 = vunpack.c.h.b16 %v1059
        %v1080 = vunpack.c.l.b16 %v1060
        %v1081 = vpack.c.b16 %v1075, %v1072
        %v1082 = vpack.c.b16 %v1076, %v1073
        %v1083 = vpack.c.b16 %v1077, %v1074
        %v1084 = vpack.c.b16 %v1078, %v1078
        %v1085 = vpack.c.b16 %v1079, %v1079
        %v1086 = vpack.c.b16 %v1080, %v1080
        %v1091 = vsel %vm692, %v1065, 0
        %v1094 = vsel %vm696, %v1084, 0
        %v1097 = vsel %vm696, %v1085, 0
        %v1100 = vsel %vm696, %v1086, 0
        %1102 = vmatprep.subr.bf16.mxu0 %v1082
        %1103 = vmatpush1.bf16.msra.mxu0 %v1081
        %1104 = vmatprep.subr.bf16.mxu0 %v1097
        %1105 = vmatpush1.bf16.msra.mxu0 %v1094
        %1106 = vmatprep.subr.bf16.mxu0 0
        %1107 = vmatpush1.bf16.msra.mxu0 0
        %1108 = vmatprep.subr.bf16.mxu0 0
        %1109 = vmatpush1.bf16.msra.mxu0 0
        %1110 = vmatprep.subr.bf16.mxu0 0
        %1111 = vmatpush1.bf16.msra.mxu0 0
        %1112 = vmatprep.subr.bf16.mxu0 0
        %1113 = vmatpush1.bf16.msra.mxu0 0
        %1114 = vmatprep.subr.bf16.mxu0 0
        %1115 = vmatpush1.bf16.msra.mxu0 0
        %1116 = vmatprep.subr.bf16.mxu0 0
        %1117 = vmatpush1.bf16.msra.mxu0 0
        %1118 = vmatprep.subr.bf16.mxu0 0
        %1119 = vmatpush1.bf16.msra.mxu0 0
        %1120 = vmatprep.subr.bf16.mxu0 0
        %1121 = vmatpush1.bf16.msra.mxu0 0
        %1122 = vmatprep.subr.bf16.mxu0 0
        %1123 = vmatpush1.bf16.msra.mxu0 0
        %1124 = vmatprep.subr.bf16.mxu0 0
        %1125 = vmatpush1.bf16.msra.mxu0 0
        %1126 = vmatprep.subr.bf16.mxu0 0
        %1127 = vmatpush1.bf16.msra.mxu0 0
        %1128 = vmatprep.subr.bf16.mxu0 0
        %1129 = vmatpush1.bf16.msra.mxu0 0
        %1130 = vmatprep.subr.bf16.mxu0 0
        %1131 = vmatpush1.bf16.msra.mxu0 0
        %1132 = vmatprep.subr.bf16.mxu0 0
        %1133 = vmatpush1.bf16.msra.mxu0 0
        %1134 = vmatprep.mubr.bf16.mxu0 0
        %1135 = vmatmul.mubr.bf16.gmra.mrb[0].mxu0 %v1091
        %v1136 = vpop.f32.mrb[0].mxu0
        %v1137 = vadd.f32 0.0, %v1136
        %v1138 = vpop.f32.mrb[0].mxu0
        %v1139 = vadd.f32 0.0, %v1138
        %v1140 = vpop.f32.mrb[0].mxu0
        %v1141 = vpop.f32.mrb[0].mxu0
        %1142 = vdwg.mxu0
        %1143 = vmatprep.subr.bf16.mxu0 0
        %1144 = vmatpush1.bf16.msra.mxu0 %v1083
        %1145 = vmatprep.subr.bf16.mxu0 0
        %1146 = vmatpush1.bf16.msra.mxu0 %v1100
        %1147 = vmatprep.subr.bf16.mxu0 0
        %1148 = vmatpush1.bf16.msra.mxu0 0
        %1149 = vmatprep.subr.bf16.mxu0 0
        %1150 = vmatpush1.bf16.msra.mxu0 0
        %1151 = vmatprep.subr.bf16.mxu0 0
        %1152 = vmatpush1.bf16.msra.mxu0 0
        %1153 = vmatprep.subr.bf16.mxu0 0
        %1154 = vmatpush1.bf16.msra.mxu0 0
        %1155 = vmatprep.subr.bf16.mxu0 0
        %1156 = vmatpush1.bf16.msra.mxu0 0
        %1157 = vmatprep.subr.bf16.mxu0 0
        %1158 = vmatpush1.bf16.msra.mxu0 0
        %1159 = vmatprep.subr.bf16.mxu0 0
        %1160 = vmatpush1.bf16.msra.mxu0 0
        %1161 = vmatprep.subr.bf16.mxu0 0
        %1162 = vmatpush1.bf16.msra.mxu0 0
        %1163 = vmatprep.subr.bf16.mxu0 0
        %1164 = vmatpush1.bf16.msra.mxu0 0
        %1165 = vmatprep.subr.bf16.mxu0 0
        %1166 = vmatpush1.bf16.msra.mxu0 0
        %1167 = vmatprep.subr.bf16.mxu0 0
        %1168 = vmatpush1.bf16.msra.mxu0 0
        %1169 = vmatprep.subr.bf16.mxu0 0
        %1170 = vmatpush1.bf16.msra.mxu0 0
        %1171 = vmatprep.subr.bf16.mxu0 0
        %1172 = vmatpush1.bf16.msra.mxu0 0
        %1173 = vmatprep.subr.bf16.mxu0 0
        %1174 = vmatpush1.bf16.msra.mxu0 0
        %1175 = vmatprep.mubr.bf16.mxu0 0
        %1176 = vmatmul.mubr.bf16.gmra.mrb[0].mxu0 %v1091
        %v1177 = vpop.f32.mrb[0].mxu0
        %v1178 = vadd.f32 0.0, %v1177
        %v1179 = vpop.f32.mrb[0].mxu0
        %v1180 = vpop.f32.mrb[0].mxu0
        %v1181 = vpop.f32.mrb[0].mxu0
        %1182 = vdwg.mxu0
        %v1183 = vadd.f32 %v858, %v1137
        %v1184 = vadd.f32 %v860, %v1139
        %v1185 = vadd.f32 %v899, %v1178
        %v1186 = vld [vmem:[#allocation2] sm:$0x3f]
        %v1188 = vcombine.high %v1186, %v1186
        %v1190 = vunpack.c.l.s4 1983009808
        %v1191 = vunpack.c.0.s8 %v1190
        %v1192 = vlaneseq
        %v1193 = vshrl.u32 %v1192, 7
        %v1194 = vsub.s32 %v1191, %v1193
        %v1195 = vrot.slane %v1186, %v1194
        %v1197 = vunpack.c.l.s4 1983009808
        %v1198 = vunpack.c.0.s8 %v1197
        %v1199 = vlaneseq
        %v1200 = vshrl.u32 %v1199, 7
        %v1201 = vsub.s32 %v1198, %v1200
        %v1202 = vrot.slane %v1188, %v1201
        %1203 = vrot.lane.b32.xlu0 %v1195, 68
        %v1204 = vpop.permute.xlu0 %1203
        %1205 = vrot.lane.b32.xlu0 %v1202, 68
        %v1206 = vpop.permute.xlu0 %1205
        %v1207 = vrot.slane %v1204, 4
        %v1208 = vrot.slane %v1206, 4
        %v1209 = vsel %vm400, %v1207, %v1208
        %vm1210 = vcmask 556032
        %v1211 = vsel %vm1210, %v1204, %v1209
        %1214 = vst [vmem:[#allocation3] sm:$0x33] %v1211
        %1215 = vst.msk [vmem:[#allocation3 + $0x8] sm:$0x3] %vm375, %v1206
        %v1216 = vld [vmem:[#allocation2] sm:$0x3f]
        %v1218 = vcombine.low %v1216, %v1216
        %v1220 = vunpack.c.l.s4 1983009808
        %v1221 = vunpack.c.0.s8 %v1220
        %v1222 = vlaneseq
        %v1223 = vshrl.u32 %v1222, 7
        %v1224 = vsub.s32 %v1221, %v1223
        %v1225 = vrot.slane %v1218, %v1224
        %v1227 = vunpack.c.l.s4 1983009808
        %v1228 = vunpack.c.0.s8 %v1227
        %v1229 = vlaneseq
        %v1230 = vshrl.u32 %v1229, 7
        %v1231 = vsub.s32 %v1228, %v1230
        %v1232 = vrot.slane %v1216, %v1231
        %1233 = vrot.lane.b32.xlu0 %v1225, 67
        %v1234 = vpop.permute.xlu0 %1233
        %1235 = vrot.lane.b32.xlu0 %v1232, 67
        %v1236 = vpop.permute.xlu0 %1235
        %v1237 = vrot.slane %v1234, 4
        %v1238 = vrot.slane %v1236, 4
        %v1239 = vsel %vm400, %v1237, %v1238
        %vm1240 = vcmask 547840
        %v1241 = vsel %vm1240, %v1234, %v1239
        %1244 = vst [vmem:[#allocation3] sm:$0xcc] %v1241
        %1245 = vst.msk [vmem:[#allocation3 + $0x8] sm:$0xc] %vm407, %v1236
        %v1246 = vld [vmem:[#allocation2] sm:$0x3f]
        %v1248 = vcombine.high %v1246, %v1246
        %v1250 = vunpack.c.l.s4 1983009808
        %v1251 = vunpack.c.0.s8 %v1250
        %v1252 = vlaneseq
        %v1253 = vshrl.u32 %v1252, 7
        %v1254 = vsub.s32 %v1251, %v1253
        %v1255 = vrot.slane %v1246, %v1254
        %v1257 = vunpack.c.l.s4 1983009808
        %v1258 = vunpack.c.0.s8 %v1257
        %v1259 = vlaneseq
        %v1260 = vshrl.u32 %v1259, 7
        %v1261 = vsub.s32 %v1258, %v1260
        %v1262 = vrot.slane %v1248, %v1261
        %1263 = vrot.lane.b32.xlu0 %v1255, 66
        %v1264 = vpop.permute.xlu0 %1263
        %1265 = vrot.lane.b32.xlu0 %v1262, 66
        %v1266 = vpop.permute.xlu0 %1265
        %v1267 = vrot.slane %v1264, 4
        %v1268 = vrot.slane %v1266, 4
        %v1269 = vsel %vm400, %v1267, %v1268
        %vm1270 = vcmask 539648
        %v1271 = vsel %vm1270, %v1264, %v1269
        %1274 = vst [vmem:[#allocation3 + $0xc] sm:$0x33] %v1271
        %1275 = vst.msk [vmem:[#allocation3 + $0x14] sm:$0x3] %vm375, %v1266
        %v1276 = vld [vmem:[#allocation2] sm:$0x3f]
        %v1278 = vcombine.low %v1276, %v1276
        %v1280 = vunpack.c.l.s4 1983009808
        %v1281 = vunpack.c.0.s8 %v1280
        %v1282 = vlaneseq
        %v1283 = vshrl.u32 %v1282, 7
        %v1284 = vsub.s32 %v1281, %v1283
        %v1285 = vrot.slane %v1278, %v1284
        %v1287 = vunpack.c.l.s4 1983009808
        %v1288 = vunpack.c.0.s8 %v1287
        %v1289 = vlaneseq
        %v1290 = vshrl.u32 %v1289, 7
        %v1291 = vsub.s32 %v1288, %v1290
        %v1292 = vrot.slane %v1276, %v1291
        %1293 = vrot.lane.b32.xlu0 %v1285, 65
        %v1294 = vpop.permute.xlu0 %1293
        %1295 = vrot.lane.b32.xlu0 %v1292, 65
        %v1296 = vpop.permute.xlu0 %1295
        %v1297 = vrot.slane %v1294, 4
        %v1298 = vrot.slane %v1296, 4
        %v1299 = vsel %vm400, %v1297, %v1298
        %vm1300 = vcmask 531456
        %v1301 = vsel %vm1300, %v1294, %v1299
        %1304 = vst [vmem:[#allocation3 + $0xc] sm:$0xcc] %v1301
        %1305 = vst.msk [vmem:[#allocation3 + $0x14] sm:$0xc] %vm407, %v1296
        %v1306 = vld [vmem:[#allocation2] sm:$0x3f]
        %v1308 = vcombine.high %v1306, %v1306
        %v1310 = vunpack.c.l.s4 1983009808
        %v1311 = vunpack.c.0.s8 %v1310
        %v1312 = vlaneseq
        %v1313 = vshrl.u32 %v1312, 7
        %v1314 = vsub.s32 %v1311, %v1313
        %v1315 = vrot.slane %v1306, %v1314
        %v1317 = vunpack.c.l.s4 1983009808
        %v1318 = vunpack.c.0.s8 %v1317
        %v1319 = vlaneseq
        %v1320 = vshrl.u32 %v1319, 7
        %v1321 = vsub.s32 %v1318, %v1320
        %v1322 = vrot.slane %v1308, %v1321
        %1323 = vrot.lane.b32.xlu0 %v1315, 64
        %v1324 = vpop.permute.xlu0 %1323
        %1325 = vrot.lane.b32.xlu0 %v1322, 64
        %v1326 = vpop.permute.xlu0 %1325
        %v1327 = vrot.slane %v1324, 4
        %v1328 = vrot.slane %v1326, 4
        %v1329 = vsel %vm400, %v1327, %v1328
        %vm1330 = vcmask 523264
        %v1331 = vsel %vm1330, %v1324, %v1329
        %1334 = vst [vmem:[#allocation3 + $0x18] sm:$0x33] %v1331
        %1335 = vst.msk [vmem:[#allocation3 + $0x20] sm:$0x3] %vm375, %v1326
        %v1336 = vld [vmem:[%s1] sm:$0xf]
        %v1337 = vld [vmem:[#allocation3] sm:$0xff]
        %v1338 = vld [vmem:[#allocation3 + $0x8] sm:$0xf]
        %v1339 = vld [vmem:[#allocation3 + $0xc] sm:$0xff]
        %v1340 = vld [vmem:[#allocation3 + $0x14] sm:$0xf]
        %v1341 = vld [vmem:[#allocation3 + $0x18] sm:$0x33]
        %v1342 = vld [vmem:[#allocation3 + $0x20] sm:$0x3]
        %v1344 = vunpack.c.l.b16 %v1336
        %v1345 = vpack.c.b16 %v1344, %v1344
        %1346 = vrot.lane.b32.xlu0 %v1345, 68
        %v1347 = vpop.permute.xlu0 %1346
        %v1354 = vunpack.c.l.b16 %v1337
        %v1355 = vunpack.c.h.b16 %v1337
        %v1356 = vunpack.c.l.b16 %v1338
        %v1357 = vunpack.c.l.b16 %v1339
        %v1358 = vunpack.c.h.b16 %v1339
        %v1359 = vunpack.c.l.b16 %v1340
        %v1360 = vunpack.c.l.b16 %v1341
        %v1361 = vunpack.c.h.b16 %v1341
        %v1362 = vunpack.c.l.b16 %v1342
        %v1363 = vpack.c.b16 %v1357, %v1354
        %v1364 = vpack.c.b16 %v1358, %v1355
        %v1365 = vpack.c.b16 %v1359, %v1356
        %v1366 = vpack.c.b16 %v1360, %v1360
        %v1367 = vpack.c.b16 %v1361, %v1361
        %v1368 = vpack.c.b16 %v1362, %v1362
        %v1373 = vsel %vm692, %v1347, 0
        %v1376 = vsel %vm696, %v1366, 0
        %v1379 = vsel %vm696, %v1367, 0
        %v1382 = vsel %vm696, %v1368, 0
        %1384 = vmatprep.subr.bf16.mxu0 %v1364
        %1385 = vmatpush1.bf16.msra.mxu0 %v1363
        %1386 = vmatprep.subr.bf16.mxu0 %v1379
        %1387 = vmatpush1.bf16.msra.mxu0 %v1376
        %1388 = vmatprep.subr.bf16.mxu0 0
        %1389 = vmatpush1.bf16.msra.mxu0 0
        %1390 = vmatprep.subr.bf16.mxu0 0
        %1391 = vmatpush1.bf16.msra.mxu0 0
        %1392 = vmatprep.subr.bf16.mxu0 0
        %1393 = vmatpush1.bf16.msra.mxu0 0
        %1394 = vmatprep.subr.bf16.mxu0 0
        %1395 = vmatpush1.bf16.msra.mxu0 0
        %1396 = vmatprep.subr.bf16.mxu0 0
        %1397 = vmatpush1.bf16.msra.mxu0 0
        %1398 = vmatprep.subr.bf16.mxu0 0
        %1399 = vmatpush1.bf16.msra.mxu0 0
        %1400 = vmatprep.subr.bf16.mxu0 0
        %1401 = vmatpush1.bf16.msra.mxu0 0
        %1402 = vmatprep.subr.bf16.mxu0 0
        %1403 = vmatpush1.bf16.msra.mxu0 0
        %1404 = vmatprep.subr.bf16.mxu0 0
        %1405 = vmatpush1.bf16.msra.mxu0 0
        %1406 = vmatprep.subr.bf16.mxu0 0
        %1407 = vmatpush1.bf16.msra.mxu0 0
        %1408 = vmatprep.subr.bf16.mxu0 0
        %1409 = vmatpush1.bf16.msra.mxu0 0
        %1410 = vmatprep.subr.bf16.mxu0 0
        %1411 = vmatpush1.bf16.msra.mxu0 0
        %1412 = vmatprep.subr.bf16.mxu0 0
        %1413 = vmatpush1.bf16.msra.mxu0 0
        %1414 = vmatprep.subr.bf16.mxu0 0
        %1415 = vmatpush1.bf16.msra.mxu0 0
        %1416 = vmatprep.mubr.bf16.mxu0 0
        %1417 = vmatmul.mubr.bf16.gmra.mrb[0].mxu0 %v1373
        %v1418 = vpop.f32.mrb[0].mxu0
        %v1419 = vadd.f32 0.0, %v1418
        %v1420 = vpop.f32.mrb[0].mxu0
        %v1421 = vadd.f32 0.0, %v1420
        %v1422 = vpop.f32.mrb[0].mxu0
        %v1423 = vpop.f32.mrb[0].mxu0
        %1424 = vdwg.mxu0
        %1425 = vmatprep.subr.bf16.mxu0 0
        %1426 = vmatpush1.bf16.msra.mxu0 %v1365
        %1427 = vmatprep.subr.bf16.mxu0 0
        %1428 = vmatpush1.bf16.msra.mxu0 %v1382
        %1429 = vmatprep.subr.bf16.mxu0 0
        %1430 = vmatpush1.bf16.msra.mxu0 0
        %1431 = vmatprep.subr.bf16.mxu0 0
        %1432 = vmatpush1.bf16.msra.mxu0 0
        %1433 = vmatprep.subr.bf16.mxu0 0
        %1434 = vmatpush1.bf16.msra.mxu0 0
        %1435 = vmatprep.subr.bf16.mxu0 0
        %1436 = vmatpush1.bf16.msra.mxu0 0
        %1437 = vmatprep.subr.bf16.mxu0 0
        %1438 = vmatpush1.bf16.msra.mxu0 0
        %1439 = vmatprep.subr.bf16.mxu0 0
        %1440 = vmatpush1.bf16.msra.mxu0 0
        %1441 = vmatprep.subr.bf16.mxu0 0
        %1442 = vmatpush1.bf16.msra.mxu0 0
        %1443 = vmatprep.subr.bf16.mxu0 0
        %1444 = vmatpush1.bf16.msra.mxu0 0
        %1445 = vmatprep.subr.bf16.mxu0 0
        %1446 = vmatpush1.bf16.msra.mxu0 0
        %1447 = vmatprep.subr.bf16.mxu0 0
        %1448 = vmatpush1.bf16.msra.mxu0 0
        %1449 = vmatprep.subr.bf16.mxu0 0
        %1450 = vmatpush1.bf16.msra.mxu0 0
        %1451 = vmatprep.subr.bf16.mxu0 0
        %1452 = vmatpush1.bf16.msra.mxu0 0
        %1453 = vmatprep.subr.bf16.mxu0 0
        %1454 = vmatpush1.bf16.msra.mxu0 0
        %1455 = vmatprep.subr.bf16.mxu0 0
        %1456 = vmatpush1.bf16.msra.mxu0 0
        %1457 = vmatprep.mubr.bf16.mxu0 0
        %1458 = vmatmul.mubr.bf16.gmra.mrb[0].mxu0 %v1373
        %v1459 = vpop.f32.mrb[0].mxu0
        %v1460 = vadd.f32 0.0, %v1459
        %v1461 = vpop.f32.mrb[0].mxu0
        %v1462 = vpop.f32.mrb[0].mxu0
        %v1463 = vpop.f32.mrb[0].mxu0
        %1464 = vdwg.mxu0
        %v1465 = vadd.f32 %v1183, %v1419
        %v1466 = vadd.f32 %v1184, %v1421
        %v1467 = vadd.f32 %v1185, %v1460
        %v1468 = vld [vmem:[#allocation2] sm:$0xff]
        %v1470 = vcombine.high %v1468, %v1468
        %v1472 = vunpack.c.l.s4 1983009808
        %v1473 = vunpack.c.0.s8 %v1472
        %v1474 = vlaneseq
        %v1475 = vshrl.u32 %v1474, 7
        %v1476 = vsub.s32 %v1473, %v1475
        %v1477 = vrot.slane %v1468, %v1476
        %v1479 = vunpack.c.l.s4 1983009808
        %v1480 = vunpack.c.0.s8 %v1479
        %v1481 = vlaneseq
        %v1482 = vshrl.u32 %v1481, 7
        %v1483 = vsub.s32 %v1480, %v1482
        %v1484 = vrot.slane %v1470, %v1483
        %1485 = vrot.lane.b32.xlu0 %v1477, 48
        %v1486 = vpop.permute.xlu0 %1485
        %1487 = vrot.lane.b32.xlu0 %v1484, 48
        %v1488 = vpop.permute.xlu0 %1487
        %v1489 = vrot.slane %v1486, 4
        %v1490 = vrot.slane %v1488, 4
        %v1491 = vsel %vm400, %v1489, %v1490
        %vm1492 = vcmask 392192
        %v1493 = vsel %vm1492, %v1486, %v1491
        %v1494 = vsel %vm1492, %v1488, %v1490
        %1497 = vst [vmem:[#allocation3] sm:$0x33] %v1493
        %1498 = vst.msk [vmem:[#allocation3 + $0x8] sm:$0x3] %vm375, %v1494
        %v1499 = vld [vmem:[#allocation2] sm:$0xff]
        %v1501 = vcombine.low %v1499, %v1499
        %v1503 = vunpack.c.l.s4 1983009808
        %v1504 = vunpack.c.0.s8 %v1503
        %v1505 = vlaneseq
        %v1506 = vshrl.u32 %v1505, 7
        %v1507 = vsub.s32 %v1504, %v1506
        %v1508 = vrot.slane %v1501, %v1507
        %v1510 = vunpack.c.l.s4 1983009808
        %v1511 = vunpack.c.0.s8 %v1510
        %v1512 = vlaneseq
        %v1513 = vshrl.u32 %v1512, 7
        %v1514 = vsub.s32 %v1511, %v1513
        %v1515 = vrot.slane %v1499, %v1514
        %1516 = vrot.lane.b32.xlu0 %v1508, 47
        %v1517 = vpop.permute.xlu0 %1516
        %1518 = vrot.lane.b32.xlu0 %v1515, 47
        %v1519 = vpop.permute.xlu0 %1518
        %v1520 = vrot.slane %v1517, 4
        %v1521 = vrot.slane %v1519, 4
        %v1522 = vsel %vm400, %v1520, %v1521
        %vm1523 = vcmask 384000
        %v1524 = vsel %vm1523, %v1517, %v1522
        %v1525 = vsel %vm1523, %v1519, %v1521
        %1528 = vst [vmem:[#allocation3] sm:$0xcc] %v1524
        %1529 = vst.msk [vmem:[#allocation3 + $0x8] sm:$0xc] %vm407, %v1525
        %v1530 = vld [vmem:[#allocation2] sm:$0xff]
        %v1532 = vcombine.high %v1530, %v1530
        %v1534 = vunpack.c.l.s4 1983009808
        %v1535 = vunpack.c.0.s8 %v1534
        %v1536 = vlaneseq
        %v1537 = vshrl.u32 %v1536, 7
        %v1538 = vsub.s32 %v1535, %v1537
        %v1539 = vrot.slane %v1530, %v1538
        %v1541 = vunpack.c.l.s4 1983009808
        %v1542 = vunpack.c.0.s8 %v1541
        %v1543 = vlaneseq
        %v1544 = vshrl.u32 %v1543, 7
        %v1545 = vsub.s32 %v1542, %v1544
        %v1546 = vrot.slane %v1532, %v1545
        %1547 = vrot.lane.b32.xlu0 %v1539, 46
        %v1548 = vpop.permute.xlu0 %1547
        %1549 = vrot.lane.b32.xlu0 %v1546, 46
        %v1550 = vpop.permute.xlu0 %1549
        %v1551 = vrot.slane %v1548, 4
        %v1552 = vrot.slane %v1550, 4
        %v1553 = vsel %vm400, %v1551, %v1552
        %vm1554 = vcmask 375808
        %v1555 = vsel %vm1554, %v1548, %v1553
        %v1556 = vsel %vm1554, %v1550, %v1552
        %1559 = vst [vmem:[#allocation3 + $0xc] sm:$0x33] %v1555
        %1560 = vst.msk [vmem:[#allocation3 + $0x14] sm:$0x3] %vm375, %v1556
        %v1561 = vld [vmem:[#allocation2] sm:$0xff]
        %v1563 = vcombine.low %v1561, %v1561
        %v1565 = vunpack.c.l.s4 1983009808
        %v1566 = vunpack.c.0.s8 %v1565
        %v1567 = vlaneseq
        %v1568 = vshrl.u32 %v1567, 7
        %v1569 = vsub.s32 %v1566, %v1568
        %v1570 = vrot.slane %v1563, %v1569
        %v1572 = vunpack.c.l.s4 1983009808
        %v1573 = vunpack.c.0.s8 %v1572
        %v1574 = vlaneseq
        %v1575 = vshrl.u32 %v1574, 7
        %v1576 = vsub.s32 %v1573, %v1575
        %v1577 = vrot.slane %v1561, %v1576
        %1578 = vrot.lane.b32.xlu0 %v1570, 45
        %v1579 = vpop.permute.xlu0 %1578
        %1580 = vrot.lane.b32.xlu0 %v1577, 45
        %v1581 = vpop.permute.xlu0 %1580
        %v1582 = vrot.slane %v1579, 4
        %v1583 = vrot.slane %v1581, 4
        %v1584 = vsel %vm400, %v1582, %v1583
        %vm1585 = vcmask 367616
        %v1586 = vsel %vm1585, %v1579, %v1584
        %v1587 = vsel %vm1585, %v1581, %v1583
        %1590 = vst [vmem:[#allocation3 + $0xc] sm:$0xcc] %v1586
        %1591 = vst.msk [vmem:[#allocation3 + $0x14] sm:$0xc] %vm407, %v1587
        %v1592 = vld [vmem:[#allocation2] sm:$0xff]
        %v1594 = vcombine.high %v1592, %v1592
        %v1596 = vunpack.c.l.s4 1983009808
        %v1597 = vunpack.c.0.s8 %v1596
        %v1598 = vlaneseq
        %v1599 = vshrl.u32 %v1598, 7
        %v1600 = vsub.s32 %v1597, %v1599
        %v1601 = vrot.slane %v1592, %v1600
        %v1603 = vunpack.c.l.s4 1983009808
        %v1604 = vunpack.c.0.s8 %v1603
        %v1605 = vlaneseq
        %v1606 = vshrl.u32 %v1605, 7
        %v1607 = vsub.s32 %v1604, %v1606
        %v1608 = vrot.slane %v1594, %v1607
        %1609 = vrot.lane.b32.xlu0 %v1601, 44
        %v1610 = vpop.permute.xlu0 %1609
        %1611 = vrot.lane.b32.xlu0 %v1608, 44
        %v1612 = vpop.permute.xlu0 %1611
        %v1613 = vrot.slane %v1610, 4
        %v1614 = vrot.slane %v1612, 4
        %v1615 = vsel %vm400, %v1613, %v1614
        %vm1616 = vcmask 359424
        %v1617 = vsel %vm1616, %v1610, %v1615
        %v1618 = vsel %vm1616, %v1612, %v1614
        %1621 = vst [vmem:[#allocation3 + $0x18] sm:$0x33] %v1617
        %1622 = vst.msk [vmem:[#allocation3 + $0x20] sm:$0x3] %vm375, %v1618
        %v1623 = vld [vmem:[%s1] sm:$0xf]
        %v1624 = vld [vmem:[#allocation3] sm:$0xff]
        %v1625 = vld [vmem:[#allocation3 + $0x8] sm:$0xf]
        %v1626 = vld [vmem:[#allocation3 + $0xc] sm:$0xff]
        %v1627 = vld [vmem:[#allocation3 + $0x14] sm:$0xf]
        %v1628 = vld [vmem:[#allocation3 + $0x18] sm:$0x33]
        %v1629 = vld [vmem:[#allocation3 + $0x20] sm:$0x3]
        %v1631 = vunpack.c.l.b16 %v1623
        %v1632 = vpack.c.b16 %v1631, %v1631
        %1633 = vrot.lane.b32.xlu0 %v1632, 48
        %v1634 = vpop.permute.xlu0 %1633
        %v1641 = vunpack.c.l.b16 %v1624
        %v1642 = vunpack.c.h.b16 %v1624
        %v1643 = vunpack.c.l.b16 %v1625
        %v1644 = vunpack.c.l.b16 %v1626
        %v1645 = vunpack.c.h.b16 %v1626
        %v1646 = vunpack.c.l.b16 %v1627
        %v1647 = vunpack.c.l.b16 %v1628
        %v1648 = vunpack.c.h.b16 %v1628
        %v1649 = vunpack.c.l.b16 %v1629
        %v1650 = vpack.c.b16 %v1644, %v1641
        %v1651 = vpack.c.b16 %v1645, %v1642
        %v1652 = vpack.c.b16 %v1646, %v1643
        %v1653 = vpack.c.b16 %v1647, %v1647
        %v1654 = vpack.c.b16 %v1648, %v1648
        %v1655 = vpack.c.b16 %v1649, %v1649
        %v1660 = vsel %vm692, %v1634, 0
        %v1663 = vsel %vm696, %v1653, 0
        %v1666 = vsel %vm696, %v1654, 0
        %v1669 = vsel %vm696, %v1655, 0
        %1671 = vmatprep.subr.bf16.mxu0 %v1651
        %1672 = vmatpush1.bf16.msra.mxu0 %v1650
        %1673 = vmatprep.subr.bf16.mxu0 %v1666
        %1674 = vmatpush1.bf16.msra.mxu0 %v1663
        %1675 = vmatprep.subr.bf16.mxu0 0
        %1676 = vmatpush1.bf16.msra.mxu0 0
        %1677 = vmatprep.subr.bf16.mxu0 0
        %1678 = vmatpush1.bf16.msra.mxu0 0
        %1679 = vmatprep.subr.bf16.mxu0 0
        %1680 = vmatpush1.bf16.msra.mxu0 0
        %1681 = vmatprep.subr.bf16.mxu0 0
        %1682 = vmatpush1.bf16.msra.mxu0 0
        %1683 = vmatprep.subr.bf16.mxu0 0
        %1684 = vmatpush1.bf16.msra.mxu0 0
        %1685 = vmatprep.subr.bf16.mxu0 0
        %1686 = vmatpush1.bf16.msra.mxu0 0
        %1687 = vmatprep.subr.bf16.mxu0 0
        %1688 = vmatpush1.bf16.msra.mxu0 0
        %1689 = vmatprep.subr.bf16.mxu0 0
        %1690 = vmatpush1.bf16.msra.mxu0 0
        %1691 = vmatprep.subr.bf16.mxu0 0
        %1692 = vmatpush1.bf16.msra.mxu0 0
        %1693 = vmatprep.subr.bf16.mxu0 0
        %1694 = vmatpush1.bf16.msra.mxu0 0
        %1695 = vmatprep.subr.bf16.mxu0 0
        %1696 = vmatpush1.bf16.msra.mxu0 0
        %1697 = vmatprep.subr.bf16.mxu0 0
        %1698 = vmatpush1.bf16.msra.mxu0 0
        %1699 = vmatprep.subr.bf16.mxu0 0
        %1700 = vmatpush1.bf16.msra.mxu0 0
        %1701 = vmatprep.subr.bf16.mxu0 0
        %1702 = vmatpush1.bf16.msra.mxu0 0
        %1703 = vmatprep.mubr.bf16.mxu0 0
        %1704 = vmatmul.mubr.bf16.gmra.mrb[0].mxu0 %v1660
        %v1705 = vpop.f32.mrb[0].mxu0
        %v1706 = vadd.f32 0.0, %v1705
        %v1707 = vpop.f32.mrb[0].mxu0
        %v1708 = vadd.f32 0.0, %v1707
        %v1709 = vpop.f32.mrb[0].mxu0
        %v1710 = vpop.f32.mrb[0].mxu0
        %1711 = vdwg.mxu0
        %1712 = vmatprep.subr.bf16.mxu0 0
        %1713 = vmatpush1.bf16.msra.mxu0 %v1652
        %1714 = vmatprep.subr.bf16.mxu0 0
        %1715 = vmatpush1.bf16.msra.mxu0 %v1669
        %1716 = vmatprep.subr.bf16.mxu0 0
        %1717 = vmatpush1.bf16.msra.mxu0 0
        %1718 = vmatprep.subr.bf16.mxu0 0
        %1719 = vmatpush1.bf16.msra.mxu0 0
        %1720 = vmatprep.subr.bf16.mxu0 0
        %1721 = vmatpush1.bf16.msra.mxu0 0
        %1722 = vmatprep.subr.bf16.mxu0 0
        %1723 = vmatpush1.bf16.msra.mxu0 0
        %1724 = vmatprep.subr.bf16.mxu0 0
        %1725 = vmatpush1.bf16.msra.mxu0 0
        %1726 = vmatprep.subr.bf16.mxu0 0
        %1727 = vmatpush1.bf16.msra.mxu0 0
        %1728 = vmatprep.subr.bf16.mxu0 0
        %1729 = vmatpush1.bf16.msra.mxu0 0
        %1730 = vmatprep.subr.bf16.mxu0 0
        %1731 = vmatpush1.bf16.msra.mxu0 0
        %1732 = vmatprep.subr.bf16.mxu0 0
        %1733 = vmatpush1.bf16.msra.mxu0 0
        %1734 = vmatprep.subr.bf16.mxu0 0
        %1735 = vmatpush1.bf16.msra.mxu0 0
        %1736 = vmatprep.subr.bf16.mxu0 0
        %1737 = vmatpush1.bf16.msra.mxu0 0
        %1738 = vmatprep.subr.bf16.mxu0 0
        %1739 = vmatpush1.bf16.msra.mxu0 0
        %1740 = vmatprep.subr.bf16.mxu0 0
        %1741 = vmatpush1.bf16.msra.mxu0 0
        %1742 = vmatprep.subr.bf16.mxu0 0
        %1743 = vmatpush1.bf16.msra.mxu0 0
        %1744 = vmatprep.mubr.bf16.mxu0 0
        %1745 = vmatmul.mubr.bf16.gmra.mrb[0].mxu0 %v1660
        %v1746 = vpop.f32.mrb[0].mxu0
        %v1747 = vadd.f32 0.0, %v1746
        %v1748 = vpop.f32.mrb[0].mxu0
        %v1749 = vpop.f32.mrb[0].mxu0
        %v1750 = vpop.f32.mrb[0].mxu0
        %1751 = vdwg.mxu0
        %v1752 = vadd.f32 %v1465, %v1706
        %v1753 = vadd.f32 %v1466, %v1708
        %v1754 = vadd.f32 %v1467, %v1747
        %v1755 = vld [vmem:[%s2] sm:$0xff]
        %1757 = vset.pattern.permute.xlu0 0
        %1758 = vperm.xlu0 %1757, %v1755
        %v1759 = vpop.permute.xlu0 %1758
        %v1761 = vmul.f32 %v1752, %v1759
        %v1762 = vmul.f32 %v1753, %v1759
        %v1763 = vmul.f32 %v1754, %v1759
        %v1764 = vld [vmem:[%s3] sm:$0xff]
        %1766 = vset.pattern.permute.xlu0 0
        %1767 = vperm.xlu0 %1766, %v1764
        %v1768 = vpop.permute.xlu0 %1767
        %v1770 = vadd.f32 %v1761, %v1768
        %v1771 = vadd.f32 %v1762, %v1768
        %v1772 = vadd.f32 %v1763, %v1768
        %v1773 = vmax.f32 %v1770, 0.0
        %v1774 = vmax.f32 %v1771, 0.0
        %v1775 = vmax.f32 %v1772, 0.0
        %vm1776 = vcmask 130048
        %1777 = vst.msk [vmem:[%s190] sm:$0xff] %vm1776, %v1773
        %1779 = vrot.lane.b32.xlu0 %v1773, 124
        %v1780 = vpop.permute.xlu0 %1779
        %vm1782 = vcmask 261248
        %1783 = vst.msk [vmem:[%s190] sm:$0xff] %vm1782, %v1780
        %1784 = vrot.lane.b32.xlu0 %v1773, 120
        %v1785 = vpop.permute.xlu0 %1784
        %vm1787 = vcmask 392448
        %1788 = vst.msk [vmem:[%s190] sm:$0xff] %vm1787, %v1785
        %1789 = vrot.lane.b32.xlu0 %v1773, 116
        %v1790 = vpop.permute.xlu0 %1789
        %vm1792 = vcmask 523648
        %1793 = vst.msk [vmem:[%s190] sm:$0xff] %vm1792, %v1790
        %1794 = vrot.lane.b32.xlu0 %v1773, 112
        %v1795 = vpop.permute.xlu0 %1794
        %vm1797 = vcmask 654848
        %1798 = vst.msk [vmem:[%s190] sm:$0xff] %vm1797, %v1795
        %1799 = vrot.lane.b32.xlu0 %v1773, 108
        %v1800 = vpop.permute.xlu0 %1799
        %vm1802 = vcmask 786048
        %1803 = vst.msk [vmem:[%s190] sm:$0xff] %vm1802, %v1800
        %1805 = vrot.lane.b32.xlu0 %v1773, 104
        %v1806 = vpop.permute.xlu0 %1805
        %1807 = vrot.lane.b32.xlu0 %v1774, 104
        %v1808 = vpop.permute.xlu0 %1807
        %vm1809 = vcmask 850944
        %v1810 = vsel %vm1809, %v1806, %v1808
        %vm1812 = vcmask 917248
        %1813 = vst.msk [vmem:[%s190] sm:$0xff] %vm1812, %v1810
        %1814 = vrot.lane.b32.xlu0 %v1774, 100
        %v1815 = vpop.permute.xlu0 %1814
        %vm1817 = vcmask 1048448
        %1818 = vst.msk [vmem:[%s190] sm:$0xff] %vm1817, %v1815
        %1819 = vrot.lane.b32.xlu0 %v1774, 96
        %v1820 = vpop.permute.xlu0 %1819
        %1822 = vst.msk [vmem:[%s190 + $0x8] sm:$0xff] %vm1776, %v1820
        %1823 = vrot.lane.b32.xlu0 %v1774, 92
        %v1824 = vpop.permute.xlu0 %1823
        %1826 = vst.msk [vmem:[%s190 + $0x8] sm:$0xff] %vm1782, %v1824
        %1827 = vrot.lane.b32.xlu0 %v1774, 88
        %v1828 = vpop.permute.xlu0 %1827
        %1830 = vst.msk [vmem:[%s190 + $0x8] sm:$0xff] %vm1787, %v1828
        %1831 = vrot.lane.b32.xlu0 %v1774, 84
        %v1832 = vpop.permute.xlu0 %1831
        %1834 = vst.msk [vmem:[%s190 + $0x8] sm:$0xff] %vm1792, %v1832
        %1835 = vrot.lane.b32.xlu0 %v1774, 80
        %v1836 = vpop.permute.xlu0 %1835
        %1838 = vst.msk [vmem:[%s190 + $0x8] sm:$0xff] %vm1797, %v1836
        %1840 = vrot.lane.b32.xlu0 %v1775, 76
        %v1841 = vpop.permute.xlu0 %1840
        %1843 = vst.msk [vmem:[%s190 + $0x8] sm:$0xff] %vm1802, %v1841
        %1844 = vrot.lane.b32.xlu0 %v1775, 72
        %v1845 = vpop.permute.xlu0 %1844
        %1847 = vst.msk [vmem:[%s190 + $0x8] sm:$0xff] %vm1812, %v1845
        %1848 = vrot.lane.b32.xlu0 %v1775, 68
        %v1849 = vpop.permute.xlu0 %1848
        %1851 = vst.msk [vmem:[%s190 + $0x8] sm:$0xff] %vm1817, %v1849
        %s1852 = sand.u32 %s115, 1
        %s1853 = scalar_lea.sflag [#allocation5], %s1852
        %s1854 = sand.u32 %s115, 1
        %s1855 = smul.addr %s1854, 16
        %s1856 = scalar_lea.vmem [#allocation4], %s1855
        // Predicated region
        $region37: #{tpu_custom_call.1} parent=35 // pred_check
          %p1857 = pneg %p125
        $region38: #{tpu_custom_call.1} parent=35 // pred_check_branch
          %1859 = sbr.rel (%p1857) target = $region40
        $region39: #{tpu_custom_call.1} parent=35 // pred_region
          %s1861 = ssub.s32 256, 256
          %1862 = vsyncadd %s1853, %s1861
          %s1863 = smul.addr %s18, 2
          %s1864 = smul.addr %s1863, 128
          %s1865 = scalar_lea.hbm %s4, %s1864
          %s1867 = sshll.u32 %s1856, 4
          %s1868 = int_to_ptr.vmem [resolvable:$true] %s1867
          %1870 = dma.vmem_to_hbm [thread:$0]  %s1868, 256, %s1865, %s1853
        $region40: #{tpu_custom_call.1} parent=35 // pred_fallthru
          _
      $region36: #{tpu_custom_call.1} parent=5 // pred_fallthru
        _
      %p1871 = scmp.le.s32.totalorder 2, %s13
      // Predicated region
      $region41: #{tpu_custom_call.1} parent=5 // pred_check
        %p1872 = pneg %p1871
      $region42: #{tpu_custom_call.1} parent=5 // pred_check_branch
        %1874 = sbr.rel (%p1872) target = $region44
      $region43: #{tpu_custom_call.1} parent=5 // pred_region
        %s1875 = ssub.s32 %s13, 2
        // Predicated region
        $region45: #{tpu_custom_call.1} parent=43 // pred_check
          %p1876 = pneg %p131
        $region46: #{tpu_custom_call.1} parent=43 // pred_check_branch
          %1878 = sbr.rel (%p1876) target = $region48
        $region47: #{tpu_custom_call.1} parent=43 // pred_region
          %s1879 = sand.u32 %s116, 1
          %s1880 = scalar_lea.sflag [#allocation5], %s1879
          %s1881 = sand.u32 %s116, 1
          %s1882 = smul.addr %s1881, 16
          %s1883 = scalar_lea.vmem [#allocation4], %s1882
          %1884 = dma.done %s1880, 256
        $region48: #{tpu_custom_call.1} parent=43 // pred_fallthru
          _
      $region44: #{tpu_custom_call.1} parent=5 // pred_fallthru
        _
    $region6: #{tpu_custom_call.1} parent=1 // loop_footer
      %s17 = sadd.s32 1, %s13
    $region7: #{tpu_custom_call.1} parent=1 // loop_footer_branch
      %12 = sbr.rel target = $region3
    $region8: #{tpu_custom_call.1} parent=1 // loop_exit
      _
    %1885 = vsyncpa [#allocation5], 1
    %s1886 = scalar_lea.sflag [#allocation5], 1
    %1887 = vsyncpa %s1886, 1

</llo_original>
